<compile_context>
chip_gen: v7x
topology: tpu7x:2x2x1
jax: 0.10.0
libtpu: 0.0.40
codegen_flags: <defaults>
</compile_context>

<pallas_src>
import functools

import jax
import jax.numpy as jnp
from jax.experimental import pallas as pl
from jax.experimental.pallas import tpu as pltpu

NUM_CHAIN = 12   # fc2_3 .. fc13_14   (torch loop i = 2..13)
NUM_SKIP = 11    # fc2_14 .. fc12_14  (torch loop i = 2..12)
_LANE = 128
_SUBLANE = 8
_NEG = -1e30     # bias for padded output logits -> exp() == 0 in the log_softmax


def _round_up(n, m):
    return ((n + m - 1) // m) * m


def _deep_dcmlp_kernel(x_ref, w1_ref, b1_ref,
                       wc_ref, bc_ref,
                       ws_ref, bsum_ref,
                       wo_ref, bo_ref,
                       out_ref,
                       skip_ref,
                       *, matmul_dtype):
    H = wc_ref.shape[-1]          # lane-padded hidden size (multiple of 128)
    md = matmul_dtype

    # --- fc1_2 + relu  (torch loop i = 1) ---
    x = jnp.dot(x_ref[...].astype(md), w1_ref[...],
                preferred_element_type=jnp.float32) + b1_ref[...]
    x = jnp.maximum(x, 0.0)

    x14 = None
    # --- chain fc{i}_{i+1} for torch i = 2..13 (statically unrolled) ---
    for idx in range(NUM_CHAIN):
        xb = x.astype(md)         # single per-layer cast, reused for slab + matmul
        if idx < NUM_SKIP:
            # Snapshot the pre-chain activation (input of fc{idx+2}_14) into the
            # bf16 slab at lane-aligned offset idx*H.
            skip_ref[:, idx * H:(idx + 1) * H] = xb
        if idx == NUM_SKIP - 1:
            # All 11 snapshots stored -> single (TB, 11H) @ (11H, H) MXU op,
            # with the 11 skip biases pre-summed on the host.
            x14 = jnp.dot(skip_ref[...], ws_ref[...],
                          preferred_element_type=jnp.float32) + bsum_ref[...]
        x = jnp.dot(xb, wc_ref[idx],
                    preferred_element_type=jnp.float32) + bc_ref[pl.ds(idx, 1), :]
        if idx == NUM_CHAIN - 1:  # fc13_14: to == 14 -> add accumulated skip sum
            x = x + x14
        x = jnp.maximum(x, 0.0)

    # --- fc14_15 (output lane-padded to a 128 multiple) ---
    out = jnp.dot(x.astype(md), wo_ref[...],
                  preferred_element_type=jnp.float32) + bo_ref[...]

    # --- numerically stable log_softmax over dim=1 (f32). Padded logits carry a
    #     -1e30 bias so they contribute 0 to the sum and never win the max.
    m = jnp.max(out, axis=1, keepdims=True)
    s = out - m
    lse = jnp.log(jnp.sum(jnp.exp(s), axis=1, keepdims=True))
    out_ref[...] = s - lse


def deep_dcmlp(x, params, *, block_batch=256, use_bf16=True):
    """Run the fused DeepDCMLPr3 forward. x: (batch, input_size) f32."""
    batch, input_size = x.shape
    hidden = params["w_chain"].shape[-1]
    out_size = params["w_out"].shape[-1]
    md = jnp.bfloat16 if use_bf16 else jnp.float32
    md_bytes = jnp.dtype(md).itemsize
    f32 = jnp.float32

    # Lane padding: pad feature dims to multiples of 128 so activations, slab
    # segments and the output tile are lane-dense (no masked vst / relayouts).
    ip = _round_up(input_size, _LANE)
    hp = _round_up(hidden, _LANE)
    op = _round_up(out_size, _LANE)

    w1 = jnp.pad(params["w1"], ((0, ip - input_size), (0, hp - hidden))).astype(md)
    wc = jnp.pad(params["w_chain"],
                 ((0, 0), (0, hp - hidden), (0, hp - hidden))).astype(md)
    ws = jnp.pad(params["w_skip"],
                 ((0, 0), (0, hp - hidden), (0, hp - hidden)))
    ws = ws.reshape(NUM_SKIP * hp, hp).astype(md)                     # (11*Hp, Hp)
    wo = jnp.pad(params["w_out"], ((0, hp - hidden), (0, op - out_size))).astype(md)

    b1 = jnp.pad(params["b1"].reshape(1, hidden),
                 ((0, 0), (0, hp - hidden))).astype(f32)
    bc = jnp.pad(params["b_chain"].reshape(NUM_CHAIN, hidden),
                 ((0, 0), (0, hp - hidden))).astype(f32)
    bsum = jnp.sum(params["b_skip"].reshape(NUM_SKIP, hidden), axis=0, keepdims=True)
    bsum = jnp.pad(bsum, ((0, 0), (0, hp - hidden))).astype(f32)
    bo = jnp.pad(params["b_out"].reshape(1, out_size),
                 ((0, 0), (0, op - out_size)), constant_values=_NEG).astype(f32)

    # Batch tiling: tb is a multiple of 8 (sublane) and is capped so the grid has
    # at least 2 steps when batch allows it (v7x has 2 TensorCores).
    half = _round_up(max(_round_up(batch, _SUBLANE) // 2, _SUBLANE), _SUBLANE)
    tb = max(_SUBLANE, min(block_batch, half))
    padded_batch = _round_up(batch, tb)
    if padded_batch != batch or ip != input_size:
        x = jnp.pad(x, ((0, padded_batch - batch), (0, ip - input_size)))
    grid = (padded_batch // tb,)

    # Explicit scoped-VMEM budget: weights worst-case double-buffered, + I/O tiles,
    # + bf16 slab, + headroom; never below the 32 MiB default, never above ~127 MiB.
    weight_bytes = (w1.size + wc.size + ws.size + wo.size) * md_bytes
    bias_bytes = (b1.size + bc.size + bsum.size + bo.size) * 4
    io_bytes = 2 * tb * (ip + op) * 4
    slab_bytes = tb * NUM_SKIP * hp * md_bytes
    est = 2 * (weight_bytes + bias_bytes) + io_bytes + slab_bytes
    vmem_limit = int(min(max(est + (4 << 20), 32 << 20), 127 << 20))

    def const(*bs):
        # Weights/biases: full-array block, constant block index -> stay VMEM-resident.
        return pl.BlockSpec(bs, lambda i, _n=len(bs): (0,) * _n)

    kernel = functools.partial(_deep_dcmlp_kernel, matmul_dtype=md)
    out = pl.pallas_call(
        kernel,
        out_shape=jax.ShapeDtypeStruct((padded_batch, op), jnp.float32),
        grid=grid,
        in_specs=[
            pl.BlockSpec((tb, ip), lambda i: (i, 0)),   # x (batch-tiled)
            const(ip, hp),                              # w1
            const(1, hp),                               # b1
            const(NUM_CHAIN, hp, hp),                   # w_chain
            const(NUM_CHAIN, hp),                       # b_chain
            const(NUM_SKIP * hp, hp),                   # w_skip merged
            const(1, hp),                               # sum of b_skip
            const(hp, op),                              # w_out
            const(1, op),                               # b_out (padded cols = -1e30)
        ],
        out_specs=pl.BlockSpec((tb, op), lambda i: (i, 0)),
        scratch_shapes=[pltpu.VMEM((tb, NUM_SKIP * hp), md)],
        compiler_params=pltpu.CompilerParams(
            dimension_semantics=("parallel",),
            vmem_limit_bytes=vmem_limit),
    )(x, w1, b1, wc, bc, ws, bsum, wo, bo)
    return out[:batch, :out_size]


def init_params(key, input_size, hidden_size, output_size):
    """nn.Linear-style init U(-1/sqrt(fan_in), 1/sqrt(fan_in)); weights stored (in, out)."""
    def linear(k, fan_in, fan_out):
        kw, kb = jax.random.split(k)
        bound = 1.0 / (fan_in ** 0.5)
        w = jax.random.uniform(kw, (fan_in, fan_out), jnp.float32, -bound, bound)
        b = jax.random.uniform(kb, (fan_out,), jnp.float32, -bound, bound)
        return w, b

    keys = jax.random.split(key, 2 + NUM_CHAIN + NUM_SKIP)
    w1, b1 = linear(keys[0], input_size, hidden_size)
    w_out, b_out = linear(keys[1], hidden_size, output_size)
    wc, bc, ws, bs = [], [], [], []
    for i in range(NUM_CHAIN):
        w, b = linear(keys[2 + i], hidden_size, hidden_size)
        wc.append(w); bc.append(b)
    for i in range(NUM_SKIP):
        w, b = linear(keys[2 + NUM_CHAIN + i], hidden_size, hidden_size)
        ws.append(w); bs.append(b)
    return {
        "w1": w1, "b1": b1,
        "w_chain": jnp.stack(wc), "b_chain": jnp.stack(bc),   # (12,H,H), (12,H)
        "w_skip": jnp.stack(ws), "b_skip": jnp.stack(bs),     # (11,H,H), (11,H)
        "w_out": w_out, "b_out": b_out,
    }


def ref_forward(x, params, *, use_bf16=True):
    """Pure-JAX reference of the torch forward (mirrors the kernel's matmul dtype)."""
    md = jnp.bfloat16 if use_bf16 else jnp.float32

    def lin(h, w, b):
        return jnp.dot(h.astype(md), w.astype(md),
                       preferred_element_type=jnp.float32) + b

    h = jnp.maximum(lin(x, params["w1"], params["b1"]), 0.0)
    x14 = jnp.zeros((x.shape[0], params["w_chain"].shape[-1]), jnp.float32)
    for i in range(NUM_CHAIN):
        if i < NUM_SKIP:
            x14 = x14 + lin(h, params["w_skip"][i], params["b_skip"][i])
        h = lin(h, params["w_chain"][i], params["b_chain"][i])
        if i == NUM_CHAIN - 1:
            h = h + x14
        h = jnp.maximum(h, 0.0)
    out = lin(h, params["w_out"], params["b_out"])
    return jax.nn.log_softmax(out, axis=1)


if __name__ == "__main__":
    batch, input_size, hidden_size, output_size = 2, 16, 32, 8

    key = jax.random.PRNGKey(0)
    kx, kp = jax.random.split(key)
    x = jax.random.normal(kx, (batch, input_size), dtype=jnp.float32)
    params = init_params(kp, input_size, hidden_size, output_size)

    out = jax.block_until_ready(deep_dcmlp(x, params))
    ref = ref_forward(x, params)

    assert out.shape == (batch, output_size)
    assert bool(jnp.isfinite(out).all()), "non-finite output"
    assert bool(jnp.allclose(out, ref, atol=2e-3, rtol=2e-3)), "mismatch vs JAX reference"

    print("KERNEL_OK")
</pallas_src>

<mosaic_0001>
module attributes {stable_mosaic.version = 11 : i64} {
  func.func @_deep_dcmlp_kernel(%arg0: i32, %arg1: memref<8x128xf32, #tpu.memory_space<vmem>>, %arg2: memref<128x128xbf16, #tpu.memory_space<vmem>>, %arg3: memref<1x128xf32, #tpu.memory_space<vmem>>, %arg4: memref<12x128x128xbf16, #tpu.memory_space<vmem>>, %arg5: memref<12x128xf32, #tpu.memory_space<vmem>>, %arg6: memref<1408x128xbf16, #tpu.memory_space<vmem>>, %arg7: memref<1x128xf32, #tpu.memory_space<vmem>>, %arg8: memref<128x128xbf16, #tpu.memory_space<vmem>>, %arg9: memref<1x128xf32, #tpu.memory_space<vmem>>, %arg10: memref<8x128xf32, #tpu.memory_space<vmem>>, %arg11: memref<8x1408xbf16, #tpu.memory_space<vmem>>) attributes {dimension_semantics = [#tpu.dimension_semantics<parallel>], iteration_bounds = array<i64: 1>, scalar_prefetch = 0 : i64, scratch_operands = 1 : i64, tpu.core_type = #tpu.core_type<tc>, window_params = [{transform_indices = @transform_0, window_bounds = array<i64: 8, 128>}, {pipeline_mode = #tpu.pipeline_mode<synchronous>, transform_indices = @transform_1, window_bounds = array<i64: 128, 128>}, {pipeline_mode = #tpu.pipeline_mode<synchronous>, transform_indices = @transform_2, window_bounds = array<i64: 1, 128>}, {pipeline_mode = #tpu.pipeline_mode<synchronous>, transform_indices = @transform_3, window_bounds = array<i64: 12, 128, 128>}, {pipeline_mode = #tpu.pipeline_mode<synchronous>, transform_indices = @transform_4, window_bounds = array<i64: 12, 128>}, {pipeline_mode = #tpu.pipeline_mode<synchronous>, transform_indices = @transform_5, window_bounds = array<i64: 1408, 128>}, {pipeline_mode = #tpu.pipeline_mode<synchronous>, transform_indices = @transform_6, window_bounds = array<i64: 1, 128>}, {pipeline_mode = #tpu.pipeline_mode<synchronous>, transform_indices = @transform_7, window_bounds = array<i64: 128, 128>}, {pipeline_mode = #tpu.pipeline_mode<synchronous>, transform_indices = @transform_8, window_bounds = array<i64: 1, 128>}, {transform_indices = @transform_9, window_bounds = array<i64: 8, 128>}]} {
    %c0 = arith.constant 0 : index
    %c0_0 = arith.constant 0 : index
    %0 = vector.load %arg1[%c0, %c0_0] : memref<8x128xf32, #tpu.memory_space<vmem>>, vector<8x128xf32>
    %1 = arith.truncf %0 : vector<8x128xf32> to vector<8x128xbf16>
    %c0_1 = arith.constant 0 : index
    %c0_2 = arith.constant 0 : index
    %2 = vector.load %arg2[%c0_1, %c0_2] : memref<128x128xbf16, #tpu.memory_space<vmem>>, vector<128x128xbf16>
    %cst = arith.constant dense<0.000000e+00> : vector<8x128xf32>
    %3 = tpu.matmul %1, %2, %cst {dimension_numbers = #tpu.dot_dimension_numbers<[1], [0], [0], [1], [0, 0, 1, 1], [], []>} : vector<8x128xbf16>, vector<128x128xbf16>, vector<8x128xf32> -> vector<8x128xf32>
    %c0_3 = arith.constant 0 : index
    %c0_4 = arith.constant 0 : index
    %4 = vector.load %arg3[%c0_3, %c0_4] : memref<1x128xf32, #tpu.memory_space<vmem>>, vector<1x128xf32>
    %5 = vector.broadcast %4 : vector<1x128xf32> to vector<8x128xf32>
    %6 = arith.addf %3, %5 : vector<8x128xf32>
    %cst_5 = arith.constant 0.000000e+00 : f32
    %7 = vector.broadcast %cst_5 : f32 to vector<8x128xf32>
    %8 = arith.maximumf %6, %7 : vector<8x128xf32>
    %9 = arith.truncf %8 : vector<8x128xf32> to vector<8x128xbf16>
    %c0_6 = arith.constant 0 : index
    %c0_7 = arith.constant 0 : index
    %10 = vector.load %arg11[%c0_6, %c0_7] : memref<8x1408xbf16, #tpu.memory_space<vmem>>, vector<8x128xbf16>
    tpu.vector_store %arg11[%c0_6, %c0_7], %9 {strides = array<i32>} : memref<8x1408xbf16, #tpu.memory_space<vmem>>, vector<8x128xbf16>,
    %c0_8 = arith.constant 0 : index
    %c0_9 = arith.constant 0 : index
    %c0_10 = arith.constant 0 : index
    %11 = vector.load %arg4[%c0_8, %c0_9, %c0_10] : memref<12x128x128xbf16, #tpu.memory_space<vmem>>, vector<1x128x128xbf16>
    %12 = vector.shape_cast %11 : vector<1x128x128xbf16> to vector<128x128xbf16>
    %cst_11 = arith.constant dense<0.000000e+00> : vector<8x128xf32>
    %13 = tpu.matmul %9, %12, %cst_11 {dimension_numbers = #tpu.dot_dimension_numbers<[1], [0], [0], [1], [0, 0, 1, 1], [], []>} : vector<8x128xbf16>, vector<128x128xbf16>, vector<8x128xf32> -> vector<8x128xf32>
    %c0_12 = arith.constant 0 : index
    %c0_13 = arith.constant 0 : index
    %14 = vector.load %arg5[%c0_12, %c0_13] : memref<12x128xf32, #tpu.memory_space<vmem>>, vector<1x128xf32>
    %15 = vector.broadcast %14 : vector<1x128xf32> to vector<8x128xf32>
    %16 = arith.addf %13, %15 : vector<8x128xf32>
    %cst_14 = arith.constant 0.000000e+00 : f32
    %17 = vector.broadcast %cst_14 : f32 to vector<8x128xf32>
    %18 = arith.maximumf %16, %17 : vector<8x128xf32>
    %19 = arith.truncf %18 : vector<8x128xf32> to vector<8x128xbf16>
    %c0_15 = arith.constant 0 : index
    %c128 = arith.constant 128 : index
    %20 = vector.load %arg11[%c0_15, %c128] : memref<8x1408xbf16, #tpu.memory_space<vmem>>, vector<8x128xbf16>
    tpu.vector_store %arg11[%c0_15, %c128], %19 {strides = array<i32>} : memref<8x1408xbf16, #tpu.memory_space<vmem>>, vector<8x128xbf16>,
    %c1 = arith.constant 1 : index
    %c0_16 = arith.constant 0 : index
    %c0_17 = arith.constant 0 : index
    %21 = vector.load %arg4[%c1, %c0_16, %c0_17] : memref<12x128x128xbf16, #tpu.memory_space<vmem>>, vector<1x128x128xbf16>
    %22 = vector.shape_cast %21 : vector<1x128x128xbf16> to vector<128x128xbf16>
    %cst_18 = arith.constant dense<0.000000e+00> : vector<8x128xf32>
    %23 = tpu.matmul %19, %22, %cst_18 {dimension_numbers = #tpu.dot_dimension_numbers<[1], [0], [0], [1], [0, 0, 1, 1], [], []>} : vector<8x128xbf16>, vector<128x128xbf16>, vector<8x128xf32> -> vector<8x128xf32>
    %c1_19 = arith.constant 1 : index
    %c0_20 = arith.constant 0 : index
    %24 = vector.load %arg5[%c1_19, %c0_20] : memref<12x128xf32, #tpu.memory_space<vmem>>, vector<1x128xf32>
    %25 = vector.broadcast %24 : vector<1x128xf32> to vector<8x128xf32>
    %26 = arith.addf %23, %25 : vector<8x128xf32>
    %cst_21 = arith.constant 0.000000e+00 : f32
    %27 = vector.broadcast %cst_21 : f32 to vector<8x128xf32>
    %28 = arith.maximumf %26, %27 : vector<8x128xf32>
    %29 = arith.truncf %28 : vector<8x128xf32> to vector<8x128xbf16>
    %c0_22 = arith.constant 0 : index
    %c256 = arith.constant 256 : index
    %30 = vector.load %arg11[%c0_22, %c256] : memref<8x1408xbf16, #tpu.memory_space<vmem>>, vector<8x128xbf16>
    tpu.vector_store %arg11[%c0_22, %c256], %29 {strides = array<i32>} : memref<8x1408xbf16, #tpu.memory_space<vmem>>, vector<8x128xbf16>,
    %c2 = arith.constant 2 : index
    %c0_23 = arith.constant 0 : index
    %c0_24 = arith.constant 0 : index
    %31 = vector.load %arg4[%c2, %c0_23, %c0_24] : memref<12x128x128xbf16, #tpu.memory_space<vmem>>, vector<1x128x128xbf16>
    %32 = vector.shape_cast %31 : vector<1x128x128xbf16> to vector<128x128xbf16>
    %cst_25 = arith.constant dense<0.000000e+00> : vector<8x128xf32>
    %33 = tpu.matmul %29, %32, %cst_25 {dimension_numbers = #tpu.dot_dimension_numbers<[1], [0], [0], [1], [0, 0, 1, 1], [], []>} : vector<8x128xbf16>, vector<128x128xbf16>, vector<8x128xf32> -> vector<8x128xf32>
    %c2_26 = arith.constant 2 : index
    %c0_27 = arith.constant 0 : index
    %34 = vector.load %arg5[%c2_26, %c0_27] : memref<12x128xf32, #tpu.memory_space<vmem>>, vector<1x128xf32>
    %35 = vector.broadcast %34 : vector<1x128xf32> to vector<8x128xf32>
    %36 = arith.addf %33, %35 : vector<8x128xf32>
    %cst_28 = arith.constant 0.000000e+00 : f32
    %37 = vector.broadcast %cst_28 : f32 to vector<8x128xf32>
    %38 = arith.maximumf %36, %37 : vector<8x128xf32>
    %39 = arith.truncf %38 : vector<8x128xf32> to vector<8x128xbf16>
    %c0_29 = arith.constant 0 : index
    %c384 = arith.constant 384 : index
    %40 = vector.load %arg11[%c0_29, %c384] : memref<8x1408xbf16, #tpu.memory_space<vmem>>, vector<8x128xbf16>
    tpu.vector_store %arg11[%c0_29, %c384], %39 {strides = array<i32>} : memref<8x1408xbf16, #tpu.memory_space<vmem>>, vector<8x128xbf16>,
    %c3 = arith.constant 3 : index
    %c0_30 = arith.constant 0 : index
    %c0_31 = arith.constant 0 : index
    %41 = vector.load %arg4[%c3, %c0_30, %c0_31] : memref<12x128x128xbf16, #tpu.memory_space<vmem>>, vector<1x128x128xbf16>
    %42 = vector.shape_cast %41 : vector<1x128x128xbf16> to vector<128x128xbf16>
    %cst_32 = arith.constant dense<0.000000e+00> : vector<8x128xf32>
    %43 = tpu.matmul %39, %42, %cst_32 {dimension_numbers = #tpu.dot_dimension_numbers<[1], [0], [0], [1], [0, 0, 1, 1], [], []>} : vector<8x128xbf16>, vector<128x128xbf16>, vector<8x128xf32> -> vector<8x128xf32>
    %c3_33 = arith.constant 3 : index
    %c0_34 = arith.constant 0 : index
    %44 = vector.load %arg5[%c3_33, %c0_34] : memref<12x128xf32, #tpu.memory_space<vmem>>, vector<1x128xf32>
    %45 = vector.broadcast %44 : vector<1x128xf32> to vector<8x128xf32>
    %46 = arith.addf %43, %45 : vector<8x128xf32>
    %cst_35 = arith.constant 0.000000e+00 : f32
    %47 = vector.broadcast %cst_35 : f32 to vector<8x128xf32>
    %48 = arith.maximumf %46, %47 : vector<8x128xf32>
    %49 = arith.truncf %48 : vector<8x128xf32> to vector<8x128xbf16>
    %c0_36 = arith.constant 0 : index
    %c512 = arith.constant 512 : index
    %50 = vector.load %arg11[%c0_36, %c512] : memref<8x1408xbf16, #tpu.memory_space<vmem>>, vector<8x128xbf16>
    tpu.vector_store %arg11[%c0_36, %c512], %49 {strides = array<i32>} : memref<8x1408xbf16, #tpu.memory_space<vmem>>, vector<8x128xbf16>,
    %c4 = arith.constant 4 : index
    %c0_37 = arith.constant 0 : index
    %c0_38 = arith.constant 0 : index
    %51 = vector.load %arg4[%c4, %c0_37, %c0_38] : memref<12x128x128xbf16, #tpu.memory_space<vmem>>, vector<1x128x128xbf16>
    %52 = vector.shape_cast %51 : vector<1x128x128xbf16> to vector<128x128xbf16>
    %cst_39 = arith.constant dense<0.000000e+00> : vector<8x128xf32>
    %53 = tpu.matmul %49, %52, %cst_39 {dimension_numbers = #tpu.dot_dimension_numbers<[1], [0], [0], [1], [0, 0, 1, 1], [], []>} : vector<8x128xbf16>, vector<128x128xbf16>, vector<8x128xf32> -> vector<8x128xf32>
    %c4_40 = arith.constant 4 : index
    %c0_41 = arith.constant 0 : index
    %54 = vector.load %arg5[%c4_40, %c0_41] : memref<12x128xf32, #tpu.memory_space<vmem>>, vector<1x128xf32>
    %55 = vector.broadcast %54 : vector<1x128xf32> to vector<8x128xf32>
    %56 = arith.addf %53, %55 : vector<8x128xf32>
    %cst_42 = arith.constant 0.000000e+00 : f32
    %57 = vector.broadcast %cst_42 : f32 to vector<8x128xf32>
    %58 = arith.maximumf %56, %57 : vector<8x128xf32>
    %59 = arith.truncf %58 : vector<8x128xf32> to vector<8x128xbf16>
    %c0_43 = arith.constant 0 : index
    %c640 = arith.constant 640 : index
    %60 = vector.load %arg11[%c0_43, %c640] : memref<8x1408xbf16, #tpu.memory_space<vmem>>, vector<8x128xbf16>
    tpu.vector_store %arg11[%c0_43, %c640], %59 {strides = array<i32>} : memref<8x1408xbf16, #tpu.memory_space<vmem>>, vector<8x128xbf16>,
    %c5 = arith.constant 5 : index
    %c0_44 = arith.constant 0 : index
    %c0_45 = arith.constant 0 : index
    %61 = vector.load %arg4[%c5, %c0_44, %c0_45] : memref<12x128x128xbf16, #tpu.memory_space<vmem>>, vector<1x128x128xbf16>
    %62 = vector.shape_cast %61 : vector<1x128x128xbf16> to vector<128x128xbf16>
    %cst_46 = arith.constant dense<0.000000e+00> : vector<8x128xf32>
    %63 = tpu.matmul %59, %62, %cst_46 {dimension_numbers = #tpu.dot_dimension_numbers<[1], [0], [0], [1], [0, 0, 1, 1], [], []>} : vector<8x128xbf16>, vector<128x128xbf16>, vector<8x128xf32> -> vector<8x128xf32>
    %c5_47 = arith.constant 5 : index
    %c0_48 = arith.constant 0 : index
    %64 = vector.load %arg5[%c5_47, %c0_48] : memref<12x128xf32, #tpu.memory_space<vmem>>, vector<1x128xf32>
    %65 = vector.broadcast %64 : vector<1x128xf32> to vector<8x128xf32>
    %66 = arith.addf %63, %65 : vector<8x128xf32>
    %cst_49 = arith.constant 0.000000e+00 : f32
    %67 = vector.broadcast %cst_49 : f32 to vector<8x128xf32>
    %68 = arith.maximumf %66, %67 : vector<8x128xf32>
    %69 = arith.truncf %68 : vector<8x128xf32> to vector<8x128xbf16>
    %c0_50 = arith.constant 0 : index
    %c768 = arith.constant 768 : index
    %70 = vector.load %arg11[%c0_50, %c768] : memref<8x1408xbf16, #tpu.memory_space<vmem>>, vector<8x128xbf16>
    tpu.vector_store %arg11[%c0_50, %c768], %69 {strides = array<i32>} : memref<8x1408xbf16, #tpu.memory_space<vmem>>, vector<8x128xbf16>,
    %c6 = arith.constant 6 : index
    %c0_51 = arith.constant 0 : index
    %c0_52 = arith.constant 0 : index
    %71 = vector.load %arg4[%c6, %c0_51, %c0_52] : memref<12x128x128xbf16, #tpu.memory_space<vmem>>, vector<1x128x128xbf16>
    %72 = vector.shape_cast %71 : vector<1x128x128xbf16> to vector<128x128xbf16>
    %cst_53 = arith.constant dense<0.000000e+00> : vector<8x128xf32>
    %73 = tpu.matmul %69, %72, %cst_53 {dimension_numbers = #tpu.dot_dimension_numbers<[1], [0], [0], [1], [0, 0, 1, 1], [], []>} : vector<8x128xbf16>, vector<128x128xbf16>, vector<8x128xf32> -> vector<8x128xf32>
    %c6_54 = arith.constant 6 : index
    %c0_55 = arith.constant 0 : index
    %74 = vector.load %arg5[%c6_54, %c0_55] : memref<12x128xf32, #tpu.memory_space<vmem>>, vector<1x128xf32>
    %75 = vector.broadcast %74 : vector<1x128xf32> to vector<8x128xf32>
    %76 = arith.addf %73, %75 : vector<8x128xf32>
    %cst_56 = arith.constant 0.000000e+00 : f32
    %77 = vector.broadcast %cst_56 : f32 to vector<8x128xf32>
    %78 = arith.maximumf %76, %77 : vector<8x128xf32>
    %79 = arith.truncf %78 : vector<8x128xf32> to vector<8x128xbf16>
    %c0_57 = arith.constant 0 : index
    %c896 = arith.constant 896 : index
    %80 = vector.load %arg11[%c0_57, %c896] : memref<8x1408xbf16, #tpu.memory_space<vmem>>, vector<8x128xbf16>
    tpu.vector_store %arg11[%c0_57, %c896], %79 {strides = array<i32>} : memref<8x1408xbf16, #tpu.memory_space<vmem>>, vector<8x128xbf16>,
    %c7 = arith.constant 7 : index
    %c0_58 = arith.constant 0 : index
    %c0_59 = arith.constant 0 : index
    %81 = vector.load %arg4[%c7, %c0_58, %c0_59] : memref<12x128x128xbf16, #tpu.memory_space<vmem>>, vector<1x128x128xbf16>
    %82 = vector.shape_cast %81 : vector<1x128x128xbf16> to vector<128x128xbf16>
    %cst_60 = arith.constant dense<0.000000e+00> : vector<8x128xf32>
    %83 = tpu.matmul %79, %82, %cst_60 {dimension_numbers = #tpu.dot_dimension_numbers<[1], [0], [0], [1], [0, 0, 1, 1], [], []>} : vector<8x128xbf16>, vector<128x128xbf16>, vector<8x128xf32> -> vector<8x128xf32>
    %c7_61 = arith.constant 7 : index
    %c0_62 = arith.constant 0 : index
    %84 = vector.load %arg5[%c7_61, %c0_62] : memref<12x128xf32, #tpu.memory_space<vmem>>, vector<1x128xf32>
    %85 = vector.broadcast %84 : vector<1x128xf32> to vector<8x128xf32>
    %86 = arith.addf %83, %85 : vector<8x128xf32>
    %cst_63 = arith.constant 0.000000e+00 : f32
    %87 = vector.broadcast %cst_63 : f32 to vector<8x128xf32>
    %88 = arith.maximumf %86, %87 : vector<8x128xf32>
    %89 = arith.truncf %88 : vector<8x128xf32> to vector<8x128xbf16>
    %c0_64 = arith.constant 0 : index
    %c1024 = arith.constant 1024 : index
    %90 = vector.load %arg11[%c0_64, %c1024] : memref<8x1408xbf16, #tpu.memory_space<vmem>>, vector<8x128xbf16>
    tpu.vector_store %arg11[%c0_64, %c1024], %89 {strides = array<i32>} : memref<8x1408xbf16, #tpu.memory_space<vmem>>, vector<8x128xbf16>,
    %c8 = arith.constant 8 : index
    %c0_65 = arith.constant 0 : index
    %c0_66 = arith.constant 0 : index
    %91 = vector.load %arg4[%c8, %c0_65, %c0_66] : memref<12x128x128xbf16, #tpu.memory_space<vmem>>, vector<1x128x128xbf16>
    %92 = vector.shape_cast %91 : vector<1x128x128xbf16> to vector<128x128xbf16>
    %cst_67 = arith.constant dense<0.000000e+00> : vector<8x128xf32>
    %93 = tpu.matmul %89, %92, %cst_67 {dimension_numbers = #tpu.dot_dimension_numbers<[1], [0], [0], [1], [0, 0, 1, 1], [], []>} : vector<8x128xbf16>, vector<128x128xbf16>, vector<8x128xf32> -> vector<8x128xf32>
    %c8_68 = arith.constant 8 : index
    %c0_69 = arith.constant 0 : index
    %94 = vector.load %arg5[%c8_68, %c0_69] : memref<12x128xf32, #tpu.memory_space<vmem>>, vector<1x128xf32>
    %95 = vector.broadcast %94 : vector<1x128xf32> to vector<8x128xf32>
    %96 = arith.addf %93, %95 : vector<8x128xf32>
    %cst_70 = arith.constant 0.000000e+00 : f32
    %97 = vector.broadcast %cst_70 : f32 to vector<8x128xf32>
    %98 = arith.maximumf %96, %97 : vector<8x128xf32>
    %99 = arith.truncf %98 : vector<8x128xf32> to vector<8x128xbf16>
    %c0_71 = arith.constant 0 : index
    %c1152 = arith.constant 1152 : index
    %100 = vector.load %arg11[%c0_71, %c1152] : memref<8x1408xbf16, #tpu.memory_space<vmem>>, vector<8x128xbf16>
    tpu.vector_store %arg11[%c0_71, %c1152], %99 {strides = array<i32>} : memref<8x1408xbf16, #tpu.memory_space<vmem>>, vector<8x128xbf16>,
    %c9 = arith.constant 9 : index
    %c0_72 = arith.constant 0 : index
    %c0_73 = arith.constant 0 : index
    %101 = vector.load %arg4[%c9, %c0_72, %c0_73] : memref<12x128x128xbf16, #tpu.memory_space<vmem>>, vector<1x128x128xbf16>
    %102 = vector.shape_cast %101 : vector<1x128x128xbf16> to vector<128x128xbf16>
    %cst_74 = arith.constant dense<0.000000e+00> : vector<8x128xf32>
    %103 = tpu.matmul %99, %102, %cst_74 {dimension_numbers = #tpu.dot_dimension_numbers<[1], [0], [0], [1], [0, 0, 1, 1], [], []>} : vector<8x128xbf16>, vector<128x128xbf16>, vector<8x128xf32> -> vector<8x128xf32>
    %c9_75 = arith.constant 9 : index
    %c0_76 = arith.constant 0 : index
    %104 = vector.load %arg5[%c9_75, %c0_76] : memref<12x128xf32, #tpu.memory_space<vmem>>, vector<1x128xf32>
    %105 = vector.broadcast %104 : vector<1x128xf32> to vector<8x128xf32>
    %106 = arith.addf %103, %105 : vector<8x128xf32>
    %cst_77 = arith.constant 0.000000e+00 : f32
    %107 = vector.broadcast %cst_77 : f32 to vector<8x128xf32>
    %108 = arith.maximumf %106, %107 : vector<8x128xf32>
    %109 = arith.truncf %108 : vector<8x128xf32> to vector<8x128xbf16>
    %c0_78 = arith.constant 0 : index
    %c1280 = arith.constant 1280 : index
    %110 = vector.load %arg11[%c0_78, %c1280] : memref<8x1408xbf16, #tpu.memory_space<vmem>>, vector<8x128xbf16>
    tpu.vector_store %arg11[%c0_78, %c1280], %109 {strides = array<i32>} : memref<8x1408xbf16, #tpu.memory_space<vmem>>, vector<8x128xbf16>,
    %c0_79 = arith.constant 0 : index
    %c0_80 = arith.constant 0 : index
    %111 = vector.load %arg11[%c0_79, %c0_80] : memref<8x1408xbf16, #tpu.memory_space<vmem>>, vector<8x1408xbf16>
    %c0_81 = arith.constant 0 : index
    %c0_82 = arith.constant 0 : index
    %112 = vector.load %arg6[%c0_81, %c0_82] : memref<1408x128xbf16, #tpu.memory_space<vmem>>, vector<1408x128xbf16>
    %cst_83 = arith.constant dense<0.000000e+00> : vector<8x128xf32>
    %113 = tpu.matmul %111, %112, %cst_83 {dimension_numbers = #tpu.dot_dimension_numbers<[1], [0], [0], [1], [0, 0, 1, 1], [], []>} : vector<8x1408xbf16>, vector<1408x128xbf16>, vector<8x128xf32> -> vector<8x128xf32>
    %c0_84 = arith.constant 0 : index
    %c0_85 = arith.constant 0 : index
    %114 = vector.load %arg7[%c0_84, %c0_85] : memref<1x128xf32, #tpu.memory_space<vmem>>, vector<1x128xf32>
    %115 = vector.broadcast %114 : vector<1x128xf32> to vector<8x128xf32>
    %116 = arith.addf %113, %115 : vector<8x128xf32>
    %c10 = arith.constant 10 : index
    %c0_86 = arith.constant 0 : index
    %c0_87 = arith.constant 0 : index
    %117 = vector.load %arg4[%c10, %c0_86, %c0_87] : memref<12x128x128xbf16, #tpu.memory_space<vmem>>, vector<1x128x128xbf16>
    %118 = vector.shape_cast %117 : vector<1x128x128xbf16> to vector<128x128xbf16>
    %cst_88 = arith.constant dense<0.000000e+00> : vector<8x128xf32>
    %119 = tpu.matmul %109, %118, %cst_88 {dimension_numbers = #tpu.dot_dimension_numbers<[1], [0], [0], [1], [0, 0, 1, 1], [], []>} : vector<8x128xbf16>, vector<128x128xbf16>, vector<8x128xf32> -> vector<8x128xf32>
    %c10_89 = arith.constant 10 : index
    %c0_90 = arith.constant 0 : index
    %120 = vector.load %arg5[%c10_89, %c0_90] : memref<12x128xf32, #tpu.memory_space<vmem>>, vector<1x128xf32>
    %121 = vector.broadcast %120 : vector<1x128xf32> to vector<8x128xf32>
    %122 = arith.addf %119, %121 : vector<8x128xf32>
    %cst_91 = arith.constant 0.000000e+00 : f32
    %123 = vector.broadcast %cst_91 : f32 to vector<8x128xf32>
    %124 = arith.maximumf %122, %123 : vector<8x128xf32>
    %125 = arith.truncf %124 : vector<8x128xf32> to vector<8x128xbf16>
    %c11 = arith.constant 11 : index
    %c0_92 = arith.constant 0 : index
    %c0_93 = arith.constant 0 : index
    %126 = vector.load %arg4[%c11, %c0_92, %c0_93] : memref<12x128x128xbf16, #tpu.memory_space<vmem>>, vector<1x128x128xbf16>
    %127 = vector.shape_cast %126 : vector<1x128x128xbf16> to vector<128x128xbf16>
    %cst_94 = arith.constant dense<0.000000e+00> : vector<8x128xf32>
    %128 = tpu.matmul %125, %127, %cst_94 {dimension_numbers = #tpu.dot_dimension_numbers<[1], [0], [0], [1], [0, 0, 1, 1], [], []>} : vector<8x128xbf16>, vector<128x128xbf16>, vector<8x128xf32> -> vector<8x128xf32>
    %c11_95 = arith.constant 11 : index
    %c0_96 = arith.constant 0 : index
    %129 = vector.load %arg5[%c11_95, %c0_96] : memref<12x128xf32, #tpu.memory_space<vmem>>, vector<1x128xf32>
    %130 = vector.broadcast %129 : vector<1x128xf32> to vector<8x128xf32>
    %131 = arith.addf %128, %130 : vector<8x128xf32>
    %132 = arith.addf %131, %116 : vector<8x128xf32>
    %cst_97 = arith.constant 0.000000e+00 : f32
    %133 = vector.broadcast %cst_97 : f32 to vector<8x128xf32>
    %134 = arith.maximumf %132, %133 : vector<8x128xf32>
    %135 = arith.truncf %134 : vector<8x128xf32> to vector<8x128xbf16>
    %c0_98 = arith.constant 0 : index
    %c0_99 = arith.constant 0 : index
    %136 = vector.load %arg8[%c0_98, %c0_99] : memref<128x128xbf16, #tpu.memory_space<vmem>>, vector<128x128xbf16>
    %cst_100 = arith.constant dense<0.000000e+00> : vector<8x128xf32>
    %137 = tpu.matmul %135, %136, %cst_100 {dimension_numbers = #tpu.dot_dimension_numbers<[1], [0], [0], [1], [0, 0, 1, 1], [], []>} : vector<8x128xbf16>, vector<128x128xbf16>, vector<8x128xf32> -> vector<8x128xf32>
    %c0_101 = arith.constant 0 : index
    %c0_102 = arith.constant 0 : index
    %138 = vector.load %arg9[%c0_101, %c0_102] : memref<1x128xf32, #tpu.memory_space<vmem>>, vector<1x128xf32>
    %139 = vector.broadcast %138 : vector<1x128xf32> to vector<8x128xf32>
    %140 = arith.addf %137, %139 : vector<8x128xf32>
    %cst_103 = arith.constant dense<0xFF800000> : vector<8xf32>
    %141 = vector.multi_reduction <maximumf>, %140, %cst_103 [1] : vector<8x128xf32> to vector<8xf32>
    %142 = vector.shape_cast %141 : vector<8xf32> to vector<8x1xf32>
    %143 = vector.broadcast %142 : vector<8x1xf32> to vector<8x128xf32>
    %144 = arith.subf %140, %143 : vector<8x128xf32>
    %145 = math.exp %144 : vector<8x128xf32>
    %cst_104 = arith.constant dense<0.000000e+00> : vector<8xf32>
    %146 = vector.multi_reduction <add>, %145, %cst_104 [1] : vector<8x128xf32> to vector<8xf32>
    %147 = vector.shape_cast %146 : vector<8xf32> to vector<8x1xf32>
    %148 = math.log %147 : vector<8x1xf32>
    %149 = vector.broadcast %148 : vector<8x1xf32> to vector<8x128xf32>
    %150 = arith.subf %144, %149 : vector<8x128xf32>
    %c0_105 = arith.constant 0 : index
    %c0_106 = arith.constant 0 : index
    %151 = vector.load %arg10[%c0_105, %c0_106] : memref<8x128xf32, #tpu.memory_space<vmem>>, vector<8x128xf32>
    tpu.vector_store %arg10[%c0_105, %c0_106], %150 {strides = array<i32>} : memref<8x128xf32, #tpu.memory_space<vmem>>, vector<8x128xf32>,
    return
  }
  func.func @transform_0(%arg0: i32) -> (i32, i32) {
    %c0_i32 = arith.constant 0 : i32
    %c0_i32_0 = arith.constant 0 : i32
    return %arg0, %c0_i32 : i32, i32
  }
  func.func @transform_1(%arg0: i32) -> (i32, i32) {
    %c0_i32 = arith.constant 0 : i32
    %c0_i32_0 = arith.constant 0 : i32
    %c0_i32_1 = arith.constant 0 : i32
    return %c0_i32, %c0_i32_0 : i32, i32
  }
  func.func @transform_2(%arg0: i32) -> (i32, i32) {
    %c0_i32 = arith.constant 0 : i32
    %c0_i32_0 = arith.constant 0 : i32
    %c0_i32_1 = arith.constant 0 : i32
    return %c0_i32, %c0_i32_0 : i32, i32
  }
  func.func @transform_3(%arg0: i32) -> (i32, i32, i32) {
    %c0_i32 = arith.constant 0 : i32
    %c0_i32_0 = arith.constant 0 : i32
    %c0_i32_1 = arith.constant 0 : i32
    %c0_i32_2 = arith.constant 0 : i32
    return %c0_i32, %c0_i32_0, %c0_i32_1 : i32, i32, i32
  }
  func.func @transform_4(%arg0: i32) -> (i32, i32) {
    %c0_i32 = arith.constant 0 : i32
    %c0_i32_0 = arith.constant 0 : i32
    %c0_i32_1 = arith.constant 0 : i32
    return %c0_i32, %c0_i32_0 : i32, i32
  }
  func.func @transform_5(%arg0: i32) -> (i32, i32) {
    %c0_i32 = arith.constant 0 : i32
    %c0_i32_0 = arith.constant 0 : i32
    %c0_i32_1 = arith.constant 0 : i32
    return %c0_i32, %c0_i32_0 : i32, i32
  }
  func.func @transform_6(%arg0: i32) -> (i32, i32) {
    %c0_i32 = arith.constant 0 : i32
    %c0_i32_0 = arith.constant 0 : i32
    %c0_i32_1 = arith.constant 0 : i32
    return %c0_i32, %c0_i32_0 : i32, i32
  }
  func.func @transform_7(%arg0: i32) -> (i32, i32) {
    %c0_i32 = arith.constant 0 : i32
    %c0_i32_0 = arith.constant 0 : i32
    %c0_i32_1 = arith.constant 0 : i32
    return %c0_i32, %c0_i32_0 : i32, i32
  }
  func.func @transform_8(%arg0: i32) -> (i32, i32) {
    %c0_i32 = arith.constant 0 : i32
    %c0_i32_0 = arith.constant 0 : i32
    %c0_i32_1 = arith.constant 0 : i32
    return %c0_i32, %c0_i32_0 : i32, i32
  }
  func.func @transform_9(%arg0: i32) -> (i32, i32) {
    %c0_i32 = arith.constant 0 : i32
    %c0_i32_0 = arith.constant 0 : i32
    return %arg0, %c0_i32 : i32, i32
  }
}

</mosaic_0001>

<llo_original>
// kernel: tpu_custom_call.1
$region0: #{tpu_custom_call.1}
  #allocation0 [shape = 'u32[]', space=smem, size = 0x4, offset = 0x4, fixed_abs, tag = 'smem constant byte address 0x4 - core index']
  #allocation1 [shape = 'u32[144,128]{1,0:T(1,128)}', space=vmem, size = 0x12000, scoped, tag = 'internal scratch']
  #allocation2 [shape = 'bf16[8,1408]{1,0:T(8,128)(2,1)}', space=vmem, size = 0x5800, scoped, tag = 'scratch operand']
  %s0 = inlined_call_operand.hbm [shape: f32[8,128], index: 0, kind: input, shape index: {}]
  %s1 = inlined_call_operand.hbm [shape: bf16[128,128], index: 1, kind: input, shape index: {}]
  %s2 = inlined_call_operand.vmem [shape: f32[1,128], index: 2, kind: input, shape index: {}]
  %s3 = inlined_call_operand.hbm [shape: bf16[12,128,128], index: 3, kind: input, shape index: {}]
  %s4 = inlined_call_operand.hbm [shape: f32[12,128], index: 4, kind: input, shape index: {}]
  %s5 = inlined_call_operand.hbm [shape: bf16[1408,128], index: 5, kind: input, shape index: {}]
  %s6 = inlined_call_operand.vmem [shape: f32[1,128], index: 6, kind: input, shape index: {}]
  %s7 = inlined_call_operand.hbm [shape: bf16[128,128], index: 7, kind: input, shape index: {}]
  %s8 = inlined_call_operand.vmem [shape: f32[1,128], index: 8, kind: input, shape index: {}]
  %s9 = inlined_call_operand.hbm [shape: f32[8,128], index: 9, kind: output, shape index: {}]
  %s10 = sld [smem:[#allocation0]]
  $region70: #{tpu_custom_call.1} parent=0
    _
  %s12 = ssub.s32 1, %s10
  %s13 = scalar_select 0, %s12, %s10
  $region1: #{tpu_custom_call.1} parent=0
    #allocation3 [shape = 'u8[4096]{0}', space=vmem, size = 0x1000, scoped, tag = 'input window, operand 0, single buffered']
    #allocation4 [shape = 's32[1]{0}', space=sflag, size = 0x4, scoped, tag = 'scoped memory for tpu_custom_call.1']
    #allocation5 [shape = 's32[1]{0}', space=sflag, size = 0x4, scoped, tag = 'scoped memory for tpu_custom_call.1']
    #allocation6 [shape = 'u8[32768]{0}', space=vmem, size = 0x8000, scoped, tag = 'input window, operand 1, single buffered']
    #allocation7 [shape = 's32[1]{0}', space=sflag, size = 0x4, scoped, tag = 'scoped memory for tpu_custom_call.1']
    #allocation8 [shape = 'u8[393216]{0}', space=vmem, size = 0x60000, scoped, tag = 'input window, operand 3, single buffered']
    #allocation9 [shape = 'u8[8192]{0}', space=vmem, size = 0x2000, scoped, tag = 'input window, operand 4, single buffered']
    #allocation10 [shape = 's32[1]{0}', space=sflag, size = 0x4, scoped, tag = 'scoped memory for tpu_custom_call.1']
    #allocation11 [shape = 'u8[360448]{0}', space=vmem, size = 0x58000, scoped, tag = 'input window, operand 5, single buffered']
    #allocation12 [shape = 'u8[32768]{0}', space=vmem, size = 0x8000, scoped, tag = 'input window, operand 7, single buffered']
    #allocation13 [shape = 's32[1]{0}', space=sflag, size = 0x4, scoped, tag = 'scoped memory for tpu_custom_call.1']
    #allocation14 [shape = 'u8[4096]{0}', space=vmem, size = 0x1000, scoped, tag = 'output window, operand 0, single buffered']
    %14 = vsyncpa [#allocation4], 0
    %15 = vsyncpa [#allocation7], 0
    %16 = vsyncpa [#allocation10], 0
    %17 = vsyncpa [#allocation13], 0
    %18 = vsyncpa [#allocation5], 0
    // Predicated region
    $region2: #{tpu_custom_call.1} parent=1 // pred_check
      _
    $region3: #{tpu_custom_call.1} parent=1 // pred_check_branch
      %20 = sbr.rel (0) target = $region5
    $region4: #{tpu_custom_call.1} parent=1 // pred_region
      %s22 = ssub.s32 128, 128
      %23 = vsyncadd [#allocation4], %s22
      %s25 = sshll.u32 [#allocation3], 4
      %s26 = int_to_ptr.vmem [resolvable:$true] %s25
      %28 = dma.hbm_to_vmem [thread:$0]  %s0, 128, %s26, [#allocation4]
    $region5: #{tpu_custom_call.1} parent=1 // pred_fallthru
      _
    // Predicated region
    $region6: #{tpu_custom_call.1} parent=1 // pred_check
      _
    $region7: #{tpu_custom_call.1} parent=1 // pred_check_branch
      %30 = sbr.rel (0) target = $region9
    $region8: #{tpu_custom_call.1} parent=1 // pred_region
      %s32 = ssub.s32 1024, 1024
      %33 = vsyncadd [#allocation7], %s32
      %s34 = sshll.u32 [#allocation6], 4
      %s35 = int_to_ptr.vmem [resolvable:$true] %s34
      %40 = dma.hbm_to_vmem [thread:$0]  %s1, 1024, %s35, [#allocation7], 64, 64, 4
    $region9: #{tpu_custom_call.1} parent=1 // pred_fallthru
      _
    // Predicated region
    $region10: #{tpu_custom_call.1} parent=1 // pred_check
      _
    $region11: #{tpu_custom_call.1} parent=1 // pred_check_branch
      %42 = sbr.rel (0) target = $region13
    $region12: #{tpu_custom_call.1} parent=1 // pred_region
      _
    $region13: #{tpu_custom_call.1} parent=1 // pred_fallthru
      _
    // Predicated region
    $region14: #{tpu_custom_call.1} parent=1 // pred_check
      _
    $region15: #{tpu_custom_call.1} parent=1 // pred_check_branch
      %44 = sbr.rel (0) target = $region17
    $region16: #{tpu_custom_call.1} parent=1 // pred_region
      %s46 = ssub.s32 12288, 12288
      %47 = vsyncadd [#allocation7], %s46
      %s48 = sshll.u32 [#allocation8], 4
      %s49 = int_to_ptr.vmem [resolvable:$true] %s48
      %54 = dma.hbm_to_vmem [thread:$0]  %s3, 12288, %s49, [#allocation7], 64, 64, 4
    $region17: #{tpu_custom_call.1} parent=1 // pred_fallthru
      _
    // Predicated region
    $region18: #{tpu_custom_call.1} parent=1 // pred_check
      _
    $region19: #{tpu_custom_call.1} parent=1 // pred_check_branch
      %56 = sbr.rel (0) target = $region21
    $region20: #{tpu_custom_call.1} parent=1 // pred_region
      %s58 = ssub.s32 256, 256
      %59 = vsyncadd [#allocation10], %s58
      %s60 = sshll.u32 [#allocation9], 4
      %s61 = int_to_ptr.vmem [resolvable:$true] %s60
      %66 = dma.hbm_to_vmem [thread:$0]  %s4, 256, %s61, [#allocation10], 128, 128, 8
    $region21: #{tpu_custom_call.1} parent=1 // pred_fallthru
      _
    // Predicated region
    $region22: #{tpu_custom_call.1} parent=1 // pred_check
      _
    $region23: #{tpu_custom_call.1} parent=1 // pred_check_branch
      %68 = sbr.rel (0) target = $region25
    $region24: #{tpu_custom_call.1} parent=1 // pred_region
      %s70 = ssub.s32 11264, 11264
      %71 = vsyncadd [#allocation10], %s70
      %s72 = sshll.u32 [#allocation11], 4
      %s73 = int_to_ptr.vmem [resolvable:$true] %s72
      %78 = dma.hbm_to_vmem [thread:$0]  %s5, 11264, %s73, [#allocation10], 64, 64, 4
    $region25: #{tpu_custom_call.1} parent=1 // pred_fallthru
      _
    // Predicated region
    $region26: #{tpu_custom_call.1} parent=1 // pred_check
      _
    $region27: #{tpu_custom_call.1} parent=1 // pred_check_branch
      %80 = sbr.rel (0) target = $region29
    $region28: #{tpu_custom_call.1} parent=1 // pred_region
      _
    $region29: #{tpu_custom_call.1} parent=1 // pred_fallthru
      _
    // Predicated region
    $region30: #{tpu_custom_call.1} parent=1 // pred_check
      _
    $region31: #{tpu_custom_call.1} parent=1 // pred_check_branch
      %82 = sbr.rel (0) target = $region33
    $region32: #{tpu_custom_call.1} parent=1 // pred_region
      %s84 = ssub.s32 1024, 1024
      %85 = vsyncadd [#allocation13], %s84
      %s86 = sshll.u32 [#allocation12], 4
      %s87 = int_to_ptr.vmem [resolvable:$true] %s86
      %92 = dma.hbm_to_vmem [thread:$0]  %s7, 1024, %s87, [#allocation13], 64, 64, 4
    $region33: #{tpu_custom_call.1} parent=1 // pred_fallthru
      _
    // Predicated region
    $region34: #{tpu_custom_call.1} parent=1 // pred_check
      _
    $region35: #{tpu_custom_call.1} parent=1 // pred_check_branch
      %94 = sbr.rel (0) target = $region37
    $region36: #{tpu_custom_call.1} parent=1 // pred_region
      _
    $region37: #{tpu_custom_call.1} parent=1 // pred_fallthru
      _
    // Predicated region
    $region38: #{tpu_custom_call.1} parent=1 // pred_check
      _
    $region39: #{tpu_custom_call.1} parent=1 // pred_check_branch
      %96 = sbr.rel (0) target = $region41
    $region40: #{tpu_custom_call.1} parent=1 // pred_region
      %97 = dma.done [#allocation4], 128
    $region41: #{tpu_custom_call.1} parent=1 // pred_fallthru
      _
    // Predicated region
    $region42: #{tpu_custom_call.1} parent=1 // pred_check
      _
    $region43: #{tpu_custom_call.1} parent=1 // pred_check_branch
      %99 = sbr.rel (0) target = $region45
    $region44: #{tpu_custom_call.1} parent=1 // pred_region
      %100 = dma.done [#allocation7], 1024
    $region45: #{tpu_custom_call.1} parent=1 // pred_fallthru
      _
    // Predicated region
    $region46: #{tpu_custom_call.1} parent=1 // pred_check
      _
    $region47: #{tpu_custom_call.1} parent=1 // pred_check_branch
      %102 = sbr.rel (0) target = $region49
    $region48: #{tpu_custom_call.1} parent=1 // pred_region
      %103 = dma.done [#allocation7], 12288
    $region49: #{tpu_custom_call.1} parent=1 // pred_fallthru
      _
    // Predicated region
    $region50: #{tpu_custom_call.1} parent=1 // pred_check
      _
    $region51: #{tpu_custom_call.1} parent=1 // pred_check_branch
      %105 = sbr.rel (0) target = $region53
    $region52: #{tpu_custom_call.1} parent=1 // pred_region
      %106 = dma.done [#allocation10], 256
    $region53: #{tpu_custom_call.1} parent=1 // pred_fallthru
      _
    // Predicated region
    $region54: #{tpu_custom_call.1} parent=1 // pred_check
      _
    $region55: #{tpu_custom_call.1} parent=1 // pred_check_branch
      %108 = sbr.rel (0) target = $region57
    $region56: #{tpu_custom_call.1} parent=1 // pred_region
      %109 = dma.done [#allocation10], 11264
    $region57: #{tpu_custom_call.1} parent=1 // pred_fallthru
      _
    // Predicated region
    $region58: #{tpu_custom_call.1} parent=1 // pred_check
      _
    $region59: #{tpu_custom_call.1} parent=1 // pred_check_branch
      %111 = sbr.rel (0) target = $region61
    $region60: #{tpu_custom_call.1} parent=1 // pred_region
      %112 = dma.done [#allocation13], 1024
    $region61: #{tpu_custom_call.1} parent=1 // pred_fallthru
      _
    %v114 = vld [vmem:[#allocation3] sm:$0xff]
    %v115 = vpack.c.bf16 %v114, %v114
    %v116 = vld [vmem:[#allocation6] sm:$0xf]
    %v117 = vld [vmem:[#allocation6 + $0x4] sm:$0xf]
    %v118 = vld [vmem:[#allocation6 + $0x8] sm:$0xf]
    %v119 = vld [vmem:[#allocation6 + $0xc] sm:$0xf]
    %v120 = vld [vmem:[#allocation6 + $0x10] sm:$0xf]
    %v121 = vld [vmem:[#allocation6 + $0x14] sm:$0xf]
    %v122 = vld [vmem:[#allocation6 + $0x18] sm:$0xf]
    %v123 = vld [vmem:[#allocation6 + $0x1c] sm:$0xf]
    %v124 = vld [vmem:[#allocation6 + $0x20] sm:$0xf]
    %v125 = vld [vmem:[#allocation6 + $0x24] sm:$0xf]
    %v126 = vld [vmem:[#allocation6 + $0x28] sm:$0xf]
    %v127 = vld [vmem:[#allocation6 + $0x2c] sm:$0xf]
    %v128 = vld [vmem:[#allocation6 + $0x30] sm:$0xf]
    %v129 = vld [vmem:[#allocation6 + $0x34] sm:$0xf]
    %v130 = vld [vmem:[#allocation6 + $0x38] sm:$0xf]
    %v131 = vld [vmem:[#allocation6 + $0x3c] sm:$0xf]
    %v132 = vld [vmem:[%s2] sm:$0x1]
    %v134 = vlaneseq
    %v135 = vshrl.u32 %v134, 7
    %v136 = vsub.s32 0, %v135
    %v137 = vrot.slane %v132, %v136
    %v155 = vunpack.c.l.b16 %v116
    %v156 = vunpack.c.l.b16 %v117
    %v157 = vunpack.c.l.b16 %v118
    %v158 = vunpack.c.l.b16 %v119
    %v159 = vunpack.c.l.b16 %v120
    %v160 = vunpack.c.l.b16 %v121
    %v161 = vunpack.c.l.b16 %v122
    %v162 = vunpack.c.l.b16 %v123
    %v163 = vunpack.c.l.b16 %v124
    %v164 = vunpack.c.l.b16 %v125
    %v165 = vunpack.c.l.b16 %v126
    %v166 = vunpack.c.l.b16 %v127
    %v167 = vunpack.c.l.b16 %v128
    %v168 = vunpack.c.l.b16 %v129
    %v169 = vunpack.c.l.b16 %v130
    %v170 = vunpack.c.l.b16 %v131
    %v171 = vpack.c.b16 %v156, %v155
    %v172 = vpack.c.b16 %v158, %v157
    %v173 = vpack.c.b16 %v160, %v159
    %v174 = vpack.c.b16 %v162, %v161
    %v175 = vpack.c.b16 %v164, %v163
    %v176 = vpack.c.b16 %v166, %v165
    %v177 = vpack.c.b16 %v168, %v167
    %v178 = vpack.c.b16 %v170, %v169
    %187 = vmatprep.subr.bf16.mxu0 0
    %188 = vmatpush1.bf16.msra.mxu0 %v171
    %189 = vmatprep.subr.bf16.mxu0 0
    %190 = vmatpush1.bf16.msra.mxu0 %v172
    %191 = vmatprep.subr.bf16.mxu0 0
    %192 = vmatpush1.bf16.msra.mxu0 %v173
    %193 = vmatprep.subr.bf16.mxu0 0
    %194 = vmatpush1.bf16.msra.mxu0 %v174
    %195 = vmatprep.subr.bf16.mxu0 0
    %196 = vmatpush1.bf16.msra.mxu0 %v175
    %197 = vmatprep.subr.bf16.mxu0 0
    %198 = vmatpush1.bf16.msra.mxu0 %v176
    %199 = vmatprep.subr.bf16.mxu0 0
    %200 = vmatpush1.bf16.msra.mxu0 %v177
    %201 = vmatprep.subr.bf16.mxu0 0
    %202 = vmatpush1.bf16.msra.mxu0 %v178
    %203 = vmatprep.subr.bf16.mxu0 0
    %204 = vmatpush1.bf16.msra.mxu0 0
    %205 = vmatprep.subr.bf16.mxu0 0
    %206 = vmatpush1.bf16.msra.mxu0 0
    %207 = vmatprep.subr.bf16.mxu0 0
    %208 = vmatpush1.bf16.msra.mxu0 0
    %209 = vmatprep.subr.bf16.mxu0 0
    %210 = vmatpush1.bf16.msra.mxu0 0
    %211 = vmatprep.subr.bf16.mxu0 0
    %212 = vmatpush1.bf16.msra.mxu0 0
    %213 = vmatprep.subr.bf16.mxu0 0
    %214 = vmatpush1.bf16.msra.mxu0 0
    %215 = vmatprep.subr.bf16.mxu0 0
    %216 = vmatpush1.bf16.msra.mxu0 0
    %217 = vmatprep.subr.bf16.mxu0 0
    %218 = vmatpush1.bf16.msra.mxu0 0
    %219 = vmatprep.mubr.bf16.mxu0 0
    %220 = vmatmul.mubr.bf16.gmra.mrb[0].mxu0 %v115
    %v221 = vpop.f32.mrb[0].mxu0
    %v222 = vadd.f32 %v137, %v221
    %v223 = vpop.f32.mrb[0].mxu0
    %v224 = vpop.f32.mrb[0].mxu0
    %v225 = vpop.f32.mrb[0].mxu0
    %226 = vdwg.mxu0
    %v227 = vmax.f32 %v222, 0.0
    %v228 = vpack.c.bf16 %v227, %v227
    %229 = vst [vmem:[#allocation2] sm:$0xf] %v228
    %v230 = vld [vmem:[#allocation8] sm:$0xf]
    %v231 = vld [vmem:[#allocation8 + $0x4] sm:$0xf]
    %v232 = vld [vmem:[#allocation8 + $0x8] sm:$0xf]
    %v233 = vld [vmem:[#allocation8 + $0xc] sm:$0xf]
    %v234 = vld [vmem:[#allocation8 + $0x10] sm:$0xf]
    %v235 = vld [vmem:[#allocation8 + $0x14] sm:$0xf]
    %v236 = vld [vmem:[#allocation8 + $0x18] sm:$0xf]
    %v237 = vld [vmem:[#allocation8 + $0x1c] sm:$0xf]
    %v238 = vld [vmem:[#allocation8 + $0x20] sm:$0xf]
    %v239 = vld [vmem:[#allocation8 + $0x24] sm:$0xf]
    %v240 = vld [vmem:[#allocation8 + $0x28] sm:$0xf]
    %v241 = vld [vmem:[#allocation8 + $0x2c] sm:$0xf]
    %v242 = vld [vmem:[#allocation8 + $0x30] sm:$0xf]
    %v243 = vld [vmem:[#allocation8 + $0x34] sm:$0xf]
    %v244 = vld [vmem:[#allocation8 + $0x38] sm:$0xf]
    %v245 = vld [vmem:[#allocation8 + $0x3c] sm:$0xf]
    %v246 = vld [vmem:[#allocation9] sm:$0x1]
    %v247 = vlaneseq
    %v248 = vshrl.u32 %v247, 7
    %v249 = vsub.s32 0, %v248
    %v250 = vrot.slane %v246, %v249
    %v267 = vunpack.c.l.b16 %v230
    %v268 = vunpack.c.l.b16 %v231
    %v269 = vunpack.c.l.b16 %v232
    %v270 = vunpack.c.l.b16 %v233
    %v271 = vunpack.c.l.b16 %v234
    %v272 = vunpack.c.l.b16 %v235
    %v273 = vunpack.c.l.b16 %v236
    %v274 = vunpack.c.l.b16 %v237
    %v275 = vunpack.c.l.b16 %v238
    %v276 = vunpack.c.l.b16 %v239
    %v277 = vunpack.c.l.b16 %v240
    %v278 = vunpack.c.l.b16 %v241
    %v279 = vunpack.c.l.b16 %v242
    %v280 = vunpack.c.l.b16 %v243
    %v281 = vunpack.c.l.b16 %v244
    %v282 = vunpack.c.l.b16 %v245
    %v283 = vpack.c.b16 %v268, %v267
    %v284 = vpack.c.b16 %v270, %v269
    %v285 = vpack.c.b16 %v272, %v271
    %v286 = vpack.c.b16 %v274, %v273
    %v287 = vpack.c.b16 %v276, %v275
    %v288 = vpack.c.b16 %v278, %v277
    %v289 = vpack.c.b16 %v280, %v279
    %v290 = vpack.c.b16 %v282, %v281
    %299 = vmatprep.subr.bf16.mxu0 0
    %300 = vmatpush1.bf16.msra.mxu0 %v283
    %301 = vmatprep.subr.bf16.mxu0 0
    %302 = vmatpush1.bf16.msra.mxu0 %v284
    %303 = vmatprep.subr.bf16.mxu0 0
    %304 = vmatpush1.bf16.msra.mxu0 %v285
    %305 = vmatprep.subr.bf16.mxu0 0
    %306 = vmatpush1.bf16.msra.mxu0 %v286
    %307 = vmatprep.subr.bf16.mxu0 0
    %308 = vmatpush1.bf16.msra.mxu0 %v287
    %309 = vmatprep.subr.bf16.mxu0 0
    %310 = vmatpush1.bf16.msra.mxu0 %v288
    %311 = vmatprep.subr.bf16.mxu0 0
    %312 = vmatpush1.bf16.msra.mxu0 %v289
    %313 = vmatprep.subr.bf16.mxu0 0
    %314 = vmatpush1.bf16.msra.mxu0 %v290
    %315 = vmatprep.subr.bf16.mxu0 0
    %316 = vmatpush1.bf16.msra.mxu0 0
    %317 = vmatprep.subr.bf16.mxu0 0
    %318 = vmatpush1.bf16.msra.mxu0 0
    %319 = vmatprep.subr.bf16.mxu0 0
    %320 = vmatpush1.bf16.msra.mxu0 0
    %321 = vmatprep.subr.bf16.mxu0 0
    %322 = vmatpush1.bf16.msra.mxu0 0
    %323 = vmatprep.subr.bf16.mxu0 0
    %324 = vmatpush1.bf16.msra.mxu0 0
    %325 = vmatprep.subr.bf16.mxu0 0
    %326 = vmatpush1.bf16.msra.mxu0 0
    %327 = vmatprep.subr.bf16.mxu0 0
    %328 = vmatpush1.bf16.msra.mxu0 0
    %329 = vmatprep.subr.bf16.mxu0 0
    %330 = vmatpush1.bf16.msra.mxu0 0
    %331 = vmatprep.mubr.bf16.mxu0 0
    %332 = vmatmul.mubr.bf16.gmra.mrb[0].mxu0 %v228
    %v333 = vpop.f32.mrb[0].mxu0
    %v334 = vadd.f32 %v250, %v333
    %v335 = vpop.f32.mrb[0].mxu0
    %v336 = vpop.f32.mrb[0].mxu0
    %v337 = vpop.f32.mrb[0].mxu0
    %338 = vdwg.mxu0
    %v339 = vmax.f32 %v334, 0.0
    %v340 = vpack.c.bf16 %v339, %v339
    %341 = vst [vmem:[#allocation2 + $0x4] sm:$0xf] %v340
    %s342 = scalar_lea.vmem [#allocation8], 64
    %v343 = vld [vmem:[%s342] sm:$0xf]
    %v344 = vld [vmem:[%s342 + $0x4] sm:$0xf]
    %v345 = vld [vmem:[%s342 + $0x8] sm:$0xf]
    %v346 = vld [vmem:[%s342 + $0xc] sm:$0xf]
    %v347 = vld [vmem:[%s342 + $0x10] sm:$0xf]
    %v348 = vld [vmem:[%s342 + $0x14] sm:$0xf]
    %v349 = vld [vmem:[%s342 + $0x18] sm:$0xf]
    %v350 = vld [vmem:[%s342 + $0x1c] sm:$0xf]
    %v351 = vld [vmem:[%s342 + $0x20] sm:$0xf]
    %v352 = vld [vmem:[%s342 + $0x24] sm:$0xf]
    %v353 = vld [vmem:[%s342 + $0x28] sm:$0xf]
    %v354 = vld [vmem:[%s342 + $0x2c] sm:$0xf]
    %v355 = vld [vmem:[%s342 + $0x30] sm:$0xf]
    %v356 = vld [vmem:[%s342 + $0x34] sm:$0xf]
    %v357 = vld [vmem:[%s342 + $0x38] sm:$0xf]
    %v358 = vld [vmem:[%s342 + $0x3c] sm:$0xf]
    %v359 = vld [vmem:[#allocation9 + $0x1] sm:$0x1]
    %v360 = vlaneseq
    %v361 = vshrl.u32 %v360, 7
    %v362 = vsub.s32 0, %v361
    %v363 = vrot.slane %v359, %v362
    %v380 = vunpack.c.l.b16 %v343
    %v381 = vunpack.c.l.b16 %v344
    %v382 = vunpack.c.l.b16 %v345
    %v383 = vunpack.c.l.b16 %v346
    %v384 = vunpack.c.l.b16 %v347
    %v385 = vunpack.c.l.b16 %v348
    %v386 = vunpack.c.l.b16 %v349
    %v387 = vunpack.c.l.b16 %v350
    %v388 = vunpack.c.l.b16 %v351
    %v389 = vunpack.c.l.b16 %v352
    %v390 = vunpack.c.l.b16 %v353
    %v391 = vunpack.c.l.b16 %v354
    %v392 = vunpack.c.l.b16 %v355
    %v393 = vunpack.c.l.b16 %v356
    %v394 = vunpack.c.l.b16 %v357
    %v395 = vunpack.c.l.b16 %v358
    %v396 = vpack.c.b16 %v381, %v380
    %v397 = vpack.c.b16 %v383, %v382
    %v398 = vpack.c.b16 %v385, %v384
    %v399 = vpack.c.b16 %v387, %v386
    %v400 = vpack.c.b16 %v389, %v388
    %v401 = vpack.c.b16 %v391, %v390
    %v402 = vpack.c.b16 %v393, %v392
    %v403 = vpack.c.b16 %v395, %v394
    %412 = vmatprep.subr.bf16.mxu0 0
    %413 = vmatpush1.bf16.msra.mxu0 %v396
    %414 = vmatprep.subr.bf16.mxu0 0
    %415 = vmatpush1.bf16.msra.mxu0 %v397
    %416 = vmatprep.subr.bf16.mxu0 0
    %417 = vmatpush1.bf16.msra.mxu0 %v398
    %418 = vmatprep.subr.bf16.mxu0 0
    %419 = vmatpush1.bf16.msra.mxu0 %v399
    %420 = vmatprep.subr.bf16.mxu0 0
    %421 = vmatpush1.bf16.msra.mxu0 %v400
    %422 = vmatprep.subr.bf16.mxu0 0
    %423 = vmatpush1.bf16.msra.mxu0 %v401
    %424 = vmatprep.subr.bf16.mxu0 0
    %425 = vmatpush1.bf16.msra.mxu0 %v402
    %426 = vmatprep.subr.bf16.mxu0 0
    %427 = vmatpush1.bf16.msra.mxu0 %v403
    %428 = vmatprep.subr.bf16.mxu0 0
    %429 = vmatpush1.bf16.msra.mxu0 0
    %430 = vmatprep.subr.bf16.mxu0 0
    %431 = vmatpush1.bf16.msra.mxu0 0
    %432 = vmatprep.subr.bf16.mxu0 0
    %433 = vmatpush1.bf16.msra.mxu0 0
    %434 = vmatprep.subr.bf16.mxu0 0
    %435 = vmatpush1.bf16.msra.mxu0 0
    %436 = vmatprep.subr.bf16.mxu0 0
    %437 = vmatpush1.bf16.msra.mxu0 0
    %438 = vmatprep.subr.bf16.mxu0 0
    %439 = vmatpush1.bf16.msra.mxu0 0
    %440 = vmatprep.subr.bf16.mxu0 0
    %441 = vmatpush1.bf16.msra.mxu0 0
    %442 = vmatprep.subr.bf16.mxu0 0
    %443 = vmatpush1.bf16.msra.mxu0 0
    %444 = vmatprep.mubr.bf16.mxu0 0
    %445 = vmatmul.mubr.bf16.gmra.mrb[0].mxu0 %v340
    %v446 = vpop.f32.mrb[0].mxu0
    %v447 = vadd.f32 %v363, %v446
    %v448 = vpop.f32.mrb[0].mxu0
    %v449 = vpop.f32.mrb[0].mxu0
    %v450 = vpop.f32.mrb[0].mxu0
    %451 = vdwg.mxu0
    %v452 = vmax.f32 %v447, 0.0
    %v453 = vpack.c.bf16 %v452, %v452
    %454 = vst [vmem:[#allocation2 + $0x8] sm:$0xf] %v453
    %s455 = scalar_lea.vmem [#allocation8], 128
    %v456 = vld [vmem:[%s455] sm:$0xf]
    %v457 = vld [vmem:[%s455 + $0x4] sm:$0xf]
    %v458 = vld [vmem:[%s455 + $0x8] sm:$0xf]
    %v459 = vld [vmem:[%s455 + $0xc] sm:$0xf]
    %v460 = vld [vmem:[%s455 + $0x10] sm:$0xf]
    %v461 = vld [vmem:[%s455 + $0x14] sm:$0xf]
    %v462 = vld [vmem:[%s455 + $0x18] sm:$0xf]
    %v463 = vld [vmem:[%s455 + $0x1c] sm:$0xf]
    %v464 = vld [vmem:[%s455 + $0x20] sm:$0xf]
    %v465 = vld [vmem:[%s455 + $0x24] sm:$0xf]
    %v466 = vld [vmem:[%s455 + $0x28] sm:$0xf]
    %v467 = vld [vmem:[%s455 + $0x2c] sm:$0xf]
    %v468 = vld [vmem:[%s455 + $0x30] sm:$0xf]
    %v469 = vld [vmem:[%s455 + $0x34] sm:$0xf]
    %v470 = vld [vmem:[%s455 + $0x38] sm:$0xf]
    %v471 = vld [vmem:[%s455 + $0x3c] sm:$0xf]
    %v472 = vld [vmem:[#allocation9 + $0x2] sm:$0x1]
    %v473 = vlaneseq
    %v474 = vshrl.u32 %v473, 7
    %v475 = vsub.s32 0, %v474
    %v476 = vrot.slane %v472, %v475
    %v493 = vunpack.c.l.b16 %v456
    %v494 = vunpack.c.l.b16 %v457
    %v495 = vunpack.c.l.b16 %v458
    %v496 = vunpack.c.l.b16 %v459
    %v497 = vunpack.c.l.b16 %v460
    %v498 = vunpack.c.l.b16 %v461
    %v499 = vunpack.c.l.b16 %v462
    %v500 = vunpack.c.l.b16 %v463
    %v501 = vunpack.c.l.b16 %v464
    %v502 = vunpack.c.l.b16 %v465
    %v503 = vunpack.c.l.b16 %v466
    %v504 = vunpack.c.l.b16 %v467
    %v505 = vunpack.c.l.b16 %v468
    %v506 = vunpack.c.l.b16 %v469
    %v507 = vunpack.c.l.b16 %v470
    %v508 = vunpack.c.l.b16 %v471
    %v509 = vpack.c.b16 %v494, %v493
    %v510 = vpack.c.b16 %v496, %v495
    %v511 = vpack.c.b16 %v498, %v497
    %v512 = vpack.c.b16 %v500, %v499
    %v513 = vpack.c.b16 %v502, %v501
    %v514 = vpack.c.b16 %v504, %v503
    %v515 = vpack.c.b16 %v506, %v505
    %v516 = vpack.c.b16 %v508, %v507
    %525 = vmatprep.subr.bf16.mxu0 0
    %526 = vmatpush1.bf16.msra.mxu0 %v509
    %527 = vmatprep.subr.bf16.mxu0 0
    %528 = vmatpush1.bf16.msra.mxu0 %v510
    %529 = vmatprep.subr.bf16.mxu0 0
    %530 = vmatpush1.bf16.msra.mxu0 %v511
    %531 = vmatprep.subr.bf16.mxu0 0
    %532 = vmatpush1.bf16.msra.mxu0 %v512
    %533 = vmatprep.subr.bf16.mxu0 0
    %534 = vmatpush1.bf16.msra.mxu0 %v513
    %535 = vmatprep.subr.bf16.mxu0 0
    %536 = vmatpush1.bf16.msra.mxu0 %v514
    %537 = vmatprep.subr.bf16.mxu0 0
    %538 = vmatpush1.bf16.msra.mxu0 %v515
    %539 = vmatprep.subr.bf16.mxu0 0
    %540 = vmatpush1.bf16.msra.mxu0 %v516
    %541 = vmatprep.subr.bf16.mxu0 0
    %542 = vmatpush1.bf16.msra.mxu0 0
    %543 = vmatprep.subr.bf16.mxu0 0
    %544 = vmatpush1.bf16.msra.mxu0 0
    %545 = vmatprep.subr.bf16.mxu0 0
    %546 = vmatpush1.bf16.msra.mxu0 0
    %547 = vmatprep.subr.bf16.mxu0 0
    %548 = vmatpush1.bf16.msra.mxu0 0
    %549 = vmatprep.subr.bf16.mxu0 0
    %550 = vmatpush1.bf16.msra.mxu0 0
    %551 = vmatprep.subr.bf16.mxu0 0
    %552 = vmatpush1.bf16.msra.mxu0 0
    %553 = vmatprep.subr.bf16.mxu0 0
    %554 = vmatpush1.bf16.msra.mxu0 0
    %555 = vmatprep.subr.bf16.mxu0 0
    %556 = vmatpush1.bf16.msra.mxu0 0
    %557 = vmatprep.mubr.bf16.mxu0 0
    %558 = vmatmul.mubr.bf16.gmra.mrb[0].mxu0 %v453
    %v559 = vpop.f32.mrb[0].mxu0
    %v560 = vadd.f32 %v476, %v559
    %v561 = vpop.f32.mrb[0].mxu0
    %v562 = vpop.f32.mrb[0].mxu0
    %v563 = vpop.f32.mrb[0].mxu0
    %564 = vdwg.mxu0
    %v565 = vmax.f32 %v560, 0.0
    %v566 = vpack.c.bf16 %v565, %v565
    %567 = vst [vmem:[#allocation2 + $0xc] sm:$0xf] %v566
    %s568 = scalar_lea.vmem [#allocation8], 192
    %v569 = vld [vmem:[%s568] sm:$0xf]
    %v570 = vld [vmem:[%s568 + $0x4] sm:$0xf]
    %v571 = vld [vmem:[%s568 + $0x8] sm:$0xf]
    %v572 = vld [vmem:[%s568 + $0xc] sm:$0xf]
    %v573 = vld [vmem:[%s568 + $0x10] sm:$0xf]
    %v574 = vld [vmem:[%s568 + $0x14] sm:$0xf]
    %v575 = vld [vmem:[%s568 + $0x18] sm:$0xf]
    %v576 = vld [vmem:[%s568 + $0x1c] sm:$0xf]
    %v577 = vld [vmem:[%s568 + $0x20] sm:$0xf]
    %v578 = vld [vmem:[%s568 + $0x24] sm:$0xf]
    %v579 = vld [vmem:[%s568 + $0x28] sm:$0xf]
    %v580 = vld [vmem:[%s568 + $0x2c] sm:$0xf]
    %v581 = vld [vmem:[%s568 + $0x30] sm:$0xf]
    %v582 = vld [vmem:[%s568 + $0x34] sm:$0xf]
    %v583 = vld [vmem:[%s568 + $0x38] sm:$0xf]
    %v584 = vld [vmem:[%s568 + $0x3c] sm:$0xf]
    %v585 = vld [vmem:[#allocation9 + $0x3] sm:$0x1]
    %v586 = vlaneseq
    %v587 = vshrl.u32 %v586, 7
    %v588 = vsub.s32 0, %v587
    %v589 = vrot.slane %v585, %v588
    %v606 = vunpack.c.l.b16 %v569
    %v607 = vunpack.c.l.b16 %v570
    %v608 = vunpack.c.l.b16 %v571
    %v609 = vunpack.c.l.b16 %v572
    %v610 = vunpack.c.l.b16 %v573
    %v611 = vunpack.c.l.b16 %v574
    %v612 = vunpack.c.l.b16 %v575
    %v613 = vunpack.c.l.b16 %v576
    %v614 = vunpack.c.l.b16 %v577
    %v615 = vunpack.c.l.b16 %v578
    %v616 = vunpack.c.l.b16 %v579
    %v617 = vunpack.c.l.b16 %v580
    %v618 = vunpack.c.l.b16 %v581
    %v619 = vunpack.c.l.b16 %v582
    %v620 = vunpack.c.l.b16 %v583
    %v621 = vunpack.c.l.b16 %v584
    %v622 = vpack.c.b16 %v607, %v606
    %v623 = vpack.c.b16 %v609, %v608
    %v624 = vpack.c.b16 %v611, %v610
    %v625 = vpack.c.b16 %v613, %v612
    %v626 = vpack.c.b16 %v615, %v614
    %v627 = vpack.c.b16 %v617, %v616
    %v628 = vpack.c.b16 %v619, %v618
    %v629 = vpack.c.b16 %v621, %v620
    %638 = vmatprep.subr.bf16.mxu0 0
    %639 = vmatpush1.bf16.msra.mxu0 %v622
    %640 = vmatprep.subr.bf16.mxu0 0
    %641 = vmatpush1.bf16.msra.mxu0 %v623
    %642 = vmatprep.subr.bf16.mxu0 0
    %643 = vmatpush1.bf16.msra.mxu0 %v624
    %644 = vmatprep.subr.bf16.mxu0 0
    %645 = vmatpush1.bf16.msra.mxu0 %v625
    %646 = vmatprep.subr.bf16.mxu0 0
    %647 = vmatpush1.bf16.msra.mxu0 %v626
    %648 = vmatprep.subr.bf16.mxu0 0
    %649 = vmatpush1.bf16.msra.mxu0 %v627
    %650 = vmatprep.subr.bf16.mxu0 0
    %651 = vmatpush1.bf16.msra.mxu0 %v628
    %652 = vmatprep.subr.bf16.mxu0 0
    %653 = vmatpush1.bf16.msra.mxu0 %v629
    %654 = vmatprep.subr.bf16.mxu0 0
    %655 = vmatpush1.bf16.msra.mxu0 0
    %656 = vmatprep.subr.bf16.mxu0 0
    %657 = vmatpush1.bf16.msra.mxu0 0
    %658 = vmatprep.subr.bf16.mxu0 0
    %659 = vmatpush1.bf16.msra.mxu0 0
    %660 = vmatprep.subr.bf16.mxu0 0
    %661 = vmatpush1.bf16.msra.mxu0 0
    %662 = vmatprep.subr.bf16.mxu0 0
    %663 = vmatpush1.bf16.msra.mxu0 0
    %664 = vmatprep.subr.bf16.mxu0 0
    %665 = vmatpush1.bf16.msra.mxu0 0
    %666 = vmatprep.subr.bf16.mxu0 0
    %667 = vmatpush1.bf16.msra.mxu0 0
    %668 = vmatprep.subr.bf16.mxu0 0
    %669 = vmatpush1.bf16.msra.mxu0 0
    %670 = vmatprep.mubr.bf16.mxu0 0
    %671 = vmatmul.mubr.bf16.gmra.mrb[0].mxu0 %v566
    %v672 = vpop.f32.mrb[0].mxu0
    %v673 = vadd.f32 %v589, %v672
    %v674 = vpop.f32.mrb[0].mxu0
    %v675 = vpop.f32.mrb[0].mxu0
    %v676 = vpop.f32.mrb[0].mxu0
    %677 = vdwg.mxu0
    %v678 = vmax.f32 %v673, 0.0
    %v679 = vpack.c.bf16 %v678, %v678
    %680 = vst [vmem:[#allocation2 + $0x10] sm:$0xf] %v679
    %s681 = scalar_lea.vmem [#allocation8], 256
    %v682 = vld [vmem:[%s681] sm:$0xf]
    %v683 = vld [vmem:[%s681 + $0x4] sm:$0xf]
    %v684 = vld [vmem:[%s681 + $0x8] sm:$0xf]
    %v685 = vld [vmem:[%s681 + $0xc] sm:$0xf]
    %v686 = vld [vmem:[%s681 + $0x10] sm:$0xf]
    %v687 = vld [vmem:[%s681 + $0x14] sm:$0xf]
    %v688 = vld [vmem:[%s681 + $0x18] sm:$0xf]
    %v689 = vld [vmem:[%s681 + $0x1c] sm:$0xf]
    %v690 = vld [vmem:[%s681 + $0x20] sm:$0xf]
    %v691 = vld [vmem:[%s681 + $0x24] sm:$0xf]
    %v692 = vld [vmem:[%s681 + $0x28] sm:$0xf]
    %v693 = vld [vmem:[%s681 + $0x2c] sm:$0xf]
    %v694 = vld [vmem:[%s681 + $0x30] sm:$0xf]
    %v695 = vld [vmem:[%s681 + $0x34] sm:$0xf]
    %v696 = vld [vmem:[%s681 + $0x38] sm:$0xf]
    %v697 = vld [vmem:[%s681 + $0x3c] sm:$0xf]
    %v698 = vld [vmem:[#allocation9 + $0x4] sm:$0x1]
    %v699 = vlaneseq
    %v700 = vshrl.u32 %v699, 7
    %v701 = vsub.s32 0, %v700
    %v702 = vrot.slane %v698, %v701
    %v719 = vunpack.c.l.b16 %v682
    %v720 = vunpack.c.l.b16 %v683
    %v721 = vunpack.c.l.b16 %v684
    %v722 = vunpack.c.l.b16 %v685
    %v723 = vunpack.c.l.b16 %v686
    %v724 = vunpack.c.l.b16 %v687
    %v725 = vunpack.c.l.b16 %v688
    %v726 = vunpack.c.l.b16 %v689
    %v727 = vunpack.c.l.b16 %v690
    %v728 = vunpack.c.l.b16 %v691
    %v729 = vunpack.c.l.b16 %v692
    %v730 = vunpack.c.l.b16 %v693
    %v731 = vunpack.c.l.b16 %v694
    %v732 = vunpack.c.l.b16 %v695
    %v733 = vunpack.c.l.b16 %v696
    %v734 = vunpack.c.l.b16 %v697
    %v735 = vpack.c.b16 %v720, %v719
    %v736 = vpack.c.b16 %v722, %v721
    %v737 = vpack.c.b16 %v724, %v723
    %v738 = vpack.c.b16 %v726, %v725
    %v739 = vpack.c.b16 %v728, %v727
    %v740 = vpack.c.b16 %v730, %v729
    %v741 = vpack.c.b16 %v732, %v731
    %v742 = vpack.c.b16 %v734, %v733
    %751 = vmatprep.subr.bf16.mxu0 0
    %752 = vmatpush1.bf16.msra.mxu0 %v735
    %753 = vmatprep.subr.bf16.mxu0 0
    %754 = vmatpush1.bf16.msra.mxu0 %v736
    %755 = vmatprep.subr.bf16.mxu0 0
    %756 = vmatpush1.bf16.msra.mxu0 %v737
    %757 = vmatprep.subr.bf16.mxu0 0
    %758 = vmatpush1.bf16.msra.mxu0 %v738
    %759 = vmatprep.subr.bf16.mxu0 0
    %760 = vmatpush1.bf16.msra.mxu0 %v739
    %761 = vmatprep.subr.bf16.mxu0 0
    %762 = vmatpush1.bf16.msra.mxu0 %v740
    %763 = vmatprep.subr.bf16.mxu0 0
    %764 = vmatpush1.bf16.msra.mxu0 %v741
    %765 = vmatprep.subr.bf16.mxu0 0
    %766 = vmatpush1.bf16.msra.mxu0 %v742
    %767 = vmatprep.subr.bf16.mxu0 0
    %768 = vmatpush1.bf16.msra.mxu0 0
    %769 = vmatprep.subr.bf16.mxu0 0
    %770 = vmatpush1.bf16.msra.mxu0 0
    %771 = vmatprep.subr.bf16.mxu0 0
    %772 = vmatpush1.bf16.msra.mxu0 0
    %773 = vmatprep.subr.bf16.mxu0 0
    %774 = vmatpush1.bf16.msra.mxu0 0
    %775 = vmatprep.subr.bf16.mxu0 0
    %776 = vmatpush1.bf16.msra.mxu0 0
    %777 = vmatprep.subr.bf16.mxu0 0
    %778 = vmatpush1.bf16.msra.mxu0 0
    %779 = vmatprep.subr.bf16.mxu0 0
    %780 = vmatpush1.bf16.msra.mxu0 0
    %781 = vmatprep.subr.bf16.mxu0 0
    %782 = vmatpush1.bf16.msra.mxu0 0
    %783 = vmatprep.mubr.bf16.mxu0 0
    %784 = vmatmul.mubr.bf16.gmra.mrb[0].mxu0 %v679
    %v785 = vpop.f32.mrb[0].mxu0
    %v786 = vadd.f32 %v702, %v785
    %v787 = vpop.f32.mrb[0].mxu0
    %v788 = vpop.f32.mrb[0].mxu0
    %v789 = vpop.f32.mrb[0].mxu0
    %790 = vdwg.mxu0
    %v791 = vmax.f32 %v786, 0.0
    %v792 = vpack.c.bf16 %v791, %v791
    %793 = vst [vmem:[#allocation2 + $0x14] sm:$0xf] %v792
    %s794 = scalar_lea.vmem [#allocation8], 320
    %v795 = vld [vmem:[%s794] sm:$0xf]
    %v796 = vld [vmem:[%s794 + $0x4] sm:$0xf]
    %v797 = vld [vmem:[%s794 + $0x8] sm:$0xf]
    %v798 = vld [vmem:[%s794 + $0xc] sm:$0xf]
    %v799 = vld [vmem:[%s794 + $0x10] sm:$0xf]
    %v800 = vld [vmem:[%s794 + $0x14] sm:$0xf]
    %v801 = vld [vmem:[%s794 + $0x18] sm:$0xf]
    %v802 = vld [vmem:[%s794 + $0x1c] sm:$0xf]
    %v803 = vld [vmem:[%s794 + $0x20] sm:$0xf]
    %v804 = vld [vmem:[%s794 + $0x24] sm:$0xf]
    %v805 = vld [vmem:[%s794 + $0x28] sm:$0xf]
    %v806 = vld [vmem:[%s794 + $0x2c] sm:$0xf]
    %v807 = vld [vmem:[%s794 + $0x30] sm:$0xf]
    %v808 = vld [vmem:[%s794 + $0x34] sm:$0xf]
    %v809 = vld [vmem:[%s794 + $0x38] sm:$0xf]
    %v810 = vld [vmem:[%s794 + $0x3c] sm:$0xf]
    %v811 = vld [vmem:[#allocation9 + $0x5] sm:$0x1]
    %v812 = vlaneseq
    %v813 = vshrl.u32 %v812, 7
    %v814 = vsub.s32 0, %v813
    %v815 = vrot.slane %v811, %v814
    %v832 = vunpack.c.l.b16 %v795
    %v833 = vunpack.c.l.b16 %v796
    %v834 = vunpack.c.l.b16 %v797
    %v835 = vunpack.c.l.b16 %v798
    %v836 = vunpack.c.l.b16 %v799
    %v837 = vunpack.c.l.b16 %v800
    %v838 = vunpack.c.l.b16 %v801
    %v839 = vunpack.c.l.b16 %v802
    %v840 = vunpack.c.l.b16 %v803
    %v841 = vunpack.c.l.b16 %v804
    %v842 = vunpack.c.l.b16 %v805
    %v843 = vunpack.c.l.b16 %v806
    %v844 = vunpack.c.l.b16 %v807
    %v845 = vunpack.c.l.b16 %v808
    %v846 = vunpack.c.l.b16 %v809
    %v847 = vunpack.c.l.b16 %v810
    %v848 = vpack.c.b16 %v833, %v832
    %v849 = vpack.c.b16 %v835, %v834
    %v850 = vpack.c.b16 %v837, %v836
    %v851 = vpack.c.b16 %v839, %v838
    %v852 = vpack.c.b16 %v841, %v840
    %v853 = vpack.c.b16 %v843, %v842
    %v854 = vpack.c.b16 %v845, %v844
    %v855 = vpack.c.b16 %v847, %v846
    %864 = vmatprep.subr.bf16.mxu0 0
    %865 = vmatpush1.bf16.msra.mxu0 %v848
    %866 = vmatprep.subr.bf16.mxu0 0
    %867 = vmatpush1.bf16.msra.mxu0 %v849
    %868 = vmatprep.subr.bf16.mxu0 0
    %869 = vmatpush1.bf16.msra.mxu0 %v850
    %870 = vmatprep.subr.bf16.mxu0 0
    %871 = vmatpush1.bf16.msra.mxu0 %v851
    %872 = vmatprep.subr.bf16.mxu0 0
    %873 = vmatpush1.bf16.msra.mxu0 %v852
    %874 = vmatprep.subr.bf16.mxu0 0
    %875 = vmatpush1.bf16.msra.mxu0 %v853
    %876 = vmatprep.subr.bf16.mxu0 0
    %877 = vmatpush1.bf16.msra.mxu0 %v854
    %878 = vmatprep.subr.bf16.mxu0 0
    %879 = vmatpush1.bf16.msra.mxu0 %v855
    %880 = vmatprep.subr.bf16.mxu0 0
    %881 = vmatpush1.bf16.msra.mxu0 0
    %882 = vmatprep.subr.bf16.mxu0 0
    %883 = vmatpush1.bf16.msra.mxu0 0
    %884 = vmatprep.subr.bf16.mxu0 0
    %885 = vmatpush1.bf16.msra.mxu0 0
    %886 = vmatprep.subr.bf16.mxu0 0
    %887 = vmatpush1.bf16.msra.mxu0 0
    %888 = vmatprep.subr.bf16.mxu0 0
    %889 = vmatpush1.bf16.msra.mxu0 0
    %890 = vmatprep.subr.bf16.mxu0 0
    %891 = vmatpush1.bf16.msra.mxu0 0
    %892 = vmatprep.subr.bf16.mxu0 0
    %893 = vmatpush1.bf16.msra.mxu0 0
    %894 = vmatprep.subr.bf16.mxu0 0
    %895 = vmatpush1.bf16.msra.mxu0 0
    %896 = vmatprep.mubr.bf16.mxu0 0
    %897 = vmatmul.mubr.bf16.gmra.mrb[0].mxu0 %v792
    %v898 = vpop.f32.mrb[0].mxu0
    %v899 = vadd.f32 %v815, %v898
    %v900 = vpop.f32.mrb[0].mxu0
    %v901 = vpop.f32.mrb[0].mxu0
    %v902 = vpop.f32.mrb[0].mxu0
    %903 = vdwg.mxu0
    %v904 = vmax.f32 %v899, 0.0
    %v905 = vpack.c.bf16 %v904, %v904
    %906 = vst [vmem:[#allocation2 + $0x18] sm:$0xf] %v905
    %s907 = scalar_lea.vmem [#allocation8], 384
    %v908 = vld [vmem:[%s907] sm:$0xf]
    %v909 = vld [vmem:[%s907 + $0x4] sm:$0xf]
    %v910 = vld [vmem:[%s907 + $0x8] sm:$0xf]
    %v911 = vld [vmem:[%s907 + $0xc] sm:$0xf]
    %v912 = vld [vmem:[%s907 + $0x10] sm:$0xf]
    %v913 = vld [vmem:[%s907 + $0x14] sm:$0xf]
    %v914 = vld [vmem:[%s907 + $0x18] sm:$0xf]
    %v915 = vld [vmem:[%s907 + $0x1c] sm:$0xf]
    %v916 = vld [vmem:[%s907 + $0x20] sm:$0xf]
    %v917 = vld [vmem:[%s907 + $0x24] sm:$0xf]
    %v918 = vld [vmem:[%s907 + $0x28] sm:$0xf]
    %v919 = vld [vmem:[%s907 + $0x2c] sm:$0xf]
    %v920 = vld [vmem:[%s907 + $0x30] sm:$0xf]
    %v921 = vld [vmem:[%s907 + $0x34] sm:$0xf]
    %v922 = vld [vmem:[%s907 + $0x38] sm:$0xf]
    %v923 = vld [vmem:[%s907 + $0x3c] sm:$0xf]
    %v924 = vld [vmem:[#allocation9 + $0x6] sm:$0x1]
    %v925 = vlaneseq
    %v926 = vshrl.u32 %v925, 7
    %v927 = vsub.s32 0, %v926
    %v928 = vrot.slane %v924, %v927
    %v945 = vunpack.c.l.b16 %v908
    %v946 = vunpack.c.l.b16 %v909
    %v947 = vunpack.c.l.b16 %v910
    %v948 = vunpack.c.l.b16 %v911
    %v949 = vunpack.c.l.b16 %v912
    %v950 = vunpack.c.l.b16 %v913
    %v951 = vunpack.c.l.b16 %v914
    %v952 = vunpack.c.l.b16 %v915
    %v953 = vunpack.c.l.b16 %v916
    %v954 = vunpack.c.l.b16 %v917
    %v955 = vunpack.c.l.b16 %v918
    %v956 = vunpack.c.l.b16 %v919
    %v957 = vunpack.c.l.b16 %v920
    %v958 = vunpack.c.l.b16 %v921
    %v959 = vunpack.c.l.b16 %v922
    %v960 = vunpack.c.l.b16 %v923
    %v961 = vpack.c.b16 %v946, %v945
    %v962 = vpack.c.b16 %v948, %v947
    %v963 = vpack.c.b16 %v950, %v949
    %v964 = vpack.c.b16 %v952, %v951
    %v965 = vpack.c.b16 %v954, %v953
    %v966 = vpack.c.b16 %v956, %v955
    %v967 = vpack.c.b16 %v958, %v957
    %v968 = vpack.c.b16 %v960, %v959
    %977 = vmatprep.subr.bf16.mxu0 0
    %978 = vmatpush1.bf16.msra.mxu0 %v961
    %979 = vmatprep.subr.bf16.mxu0 0
    %980 = vmatpush1.bf16.msra.mxu0 %v962
    %981 = vmatprep.subr.bf16.mxu0 0
    %982 = vmatpush1.bf16.msra.mxu0 %v963
    %983 = vmatprep.subr.bf16.mxu0 0
    %984 = vmatpush1.bf16.msra.mxu0 %v964
    %985 = vmatprep.subr.bf16.mxu0 0
    %986 = vmatpush1.bf16.msra.mxu0 %v965
    %987 = vmatprep.subr.bf16.mxu0 0
    %988 = vmatpush1.bf16.msra.mxu0 %v966
    %989 = vmatprep.subr.bf16.mxu0 0
    %990 = vmatpush1.bf16.msra.mxu0 %v967
    %991 = vmatprep.subr.bf16.mxu0 0
    %992 = vmatpush1.bf16.msra.mxu0 %v968
    %993 = vmatprep.subr.bf16.mxu0 0
    %994 = vmatpush1.bf16.msra.mxu0 0
    %995 = vmatprep.subr.bf16.mxu0 0
    %996 = vmatpush1.bf16.msra.mxu0 0
    %997 = vmatprep.subr.bf16.mxu0 0
    %998 = vmatpush1.bf16.msra.mxu0 0
    %999 = vmatprep.subr.bf16.mxu0 0
    %1000 = vmatpush1.bf16.msra.mxu0 0
    %1001 = vmatprep.subr.bf16.mxu0 0
    %1002 = vmatpush1.bf16.msra.mxu0 0
    %1003 = vmatprep.subr.bf16.mxu0 0
    %1004 = vmatpush1.bf16.msra.mxu0 0
    %1005 = vmatprep.subr.bf16.mxu0 0
    %1006 = vmatpush1.bf16.msra.mxu0 0
    %1007 = vmatprep.subr.bf16.mxu0 0
    %1008 = vmatpush1.bf16.msra.mxu0 0
    %1009 = vmatprep.mubr.bf16.mxu0 0
    %1010 = vmatmul.mubr.bf16.gmra.mrb[0].mxu0 %v905
    %v1011 = vpop.f32.mrb[0].mxu0
    %v1012 = vadd.f32 %v928, %v1011
    %v1013 = vpop.f32.mrb[0].mxu0
    %v1014 = vpop.f32.mrb[0].mxu0
    %v1015 = vpop.f32.mrb[0].mxu0
    %1016 = vdwg.mxu0
    %v1017 = vmax.f32 %v1012, 0.0
    %v1018 = vpack.c.bf16 %v1017, %v1017
    %1019 = vst [vmem:[#allocation2 + $0x1c] sm:$0xf] %v1018
    %s1020 = scalar_lea.vmem [#allocation8], 448
    %v1021 = vld [vmem:[%s1020] sm:$0xf]
    %v1022 = vld [vmem:[%s1020 + $0x4] sm:$0xf]
    %v1023 = vld [vmem:[%s1020 + $0x8] sm:$0xf]
    %v1024 = vld [vmem:[%s1020 + $0xc] sm:$0xf]
    %v1025 = vld [vmem:[%s1020 + $0x10] sm:$0xf]
    %v1026 = vld [vmem:[%s1020 + $0x14] sm:$0xf]
    %v1027 = vld [vmem:[%s1020 + $0x18] sm:$0xf]
    %v1028 = vld [vmem:[%s1020 + $0x1c] sm:$0xf]
    %v1029 = vld [vmem:[%s1020 + $0x20] sm:$0xf]
    %v1030 = vld [vmem:[%s1020 + $0x24] sm:$0xf]
    %v1031 = vld [vmem:[%s1020 + $0x28] sm:$0xf]
    %v1032 = vld [vmem:[%s1020 + $0x2c] sm:$0xf]
    %v1033 = vld [vmem:[%s1020 + $0x30] sm:$0xf]
    %v1034 = vld [vmem:[%s1020 + $0x34] sm:$0xf]
    %v1035 = vld [vmem:[%s1020 + $0x38] sm:$0xf]
    %v1036 = vld [vmem:[%s1020 + $0x3c] sm:$0xf]
    %v1037 = vld [vmem:[#allocation9 + $0x7] sm:$0x1]
    %v1038 = vlaneseq
    %v1039 = vshrl.u32 %v1038, 7
    %v1040 = vsub.s32 0, %v1039
    %v1041 = vrot.slane %v1037, %v1040
    %v1058 = vunpack.c.l.b16 %v1021
    %v1059 = vunpack.c.l.b16 %v1022
    %v1060 = vunpack.c.l.b16 %v1023
    %v1061 = vunpack.c.l.b16 %v1024
    %v1062 = vunpack.c.l.b16 %v1025
    %v1063 = vunpack.c.l.b16 %v1026
    %v1064 = vunpack.c.l.b16 %v1027
    %v1065 = vunpack.c.l.b16 %v1028
    %v1066 = vunpack.c.l.b16 %v1029
    %v1067 = vunpack.c.l.b16 %v1030
    %v1068 = vunpack.c.l.b16 %v1031
    %v1069 = vunpack.c.l.b16 %v1032
    %v1070 = vunpack.c.l.b16 %v1033
    %v1071 = vunpack.c.l.b16 %v1034
    %v1072 = vunpack.c.l.b16 %v1035
    %v1073 = vunpack.c.l.b16 %v1036
    %v1074 = vpack.c.b16 %v1059, %v1058
    %v1075 = vpack.c.b16 %v1061, %v1060
    %v1076 = vpack.c.b16 %v1063, %v1062
    %v1077 = vpack.c.b16 %v1065, %v1064
    %v1078 = vpack.c.b16 %v1067, %v1066
    %v1079 = vpack.c.b16 %v1069, %v1068
    %v1080 = vpack.c.b16 %v1071, %v1070
    %v1081 = vpack.c.b16 %v1073, %v1072
    %1090 = vmatprep.subr.bf16.mxu0 0
    %1091 = vmatpush1.bf16.msra.mxu0 %v1074
    %1092 = vmatprep.subr.bf16.mxu0 0
    %1093 = vmatpush1.bf16.msra.mxu0 %v1075
    %1094 = vmatprep.subr.bf16.mxu0 0
    %1095 = vmatpush1.bf16.msra.mxu0 %v1076
    %1096 = vmatprep.subr.bf16.mxu0 0
    %1097 = vmatpush1.bf16.msra.mxu0 %v1077
    %1098 = vmatprep.subr.bf16.mxu0 0
    %1099 = vmatpush1.bf16.msra.mxu0 %v1078
    %1100 = vmatprep.subr.bf16.mxu0 0
    %1101 = vmatpush1.bf16.msra.mxu0 %v1079
    %1102 = vmatprep.subr.bf16.mxu0 0
    %1103 = vmatpush1.bf16.msra.mxu0 %v1080
    %1104 = vmatprep.subr.bf16.mxu0 0
    %1105 = vmatpush1.bf16.msra.mxu0 %v1081
    %1106 = vmatprep.subr.bf16.mxu0 0
    %1107 = vmatpush1.bf16.msra.mxu0 0
    %1108 = vmatprep.subr.bf16.mxu0 0
    %1109 = vmatpush1.bf16.msra.mxu0 0
    %1110 = vmatprep.subr.bf16.mxu0 0
    %1111 = vmatpush1.bf16.msra.mxu0 0
    %1112 = vmatprep.subr.bf16.mxu0 0
    %1113 = vmatpush1.bf16.msra.mxu0 0
    %1114 = vmatprep.subr.bf16.mxu0 0
    %1115 = vmatpush1.bf16.msra.mxu0 0
    %1116 = vmatprep.subr.bf16.mxu0 0
    %1117 = vmatpush1.bf16.msra.mxu0 0
    %1118 = vmatprep.subr.bf16.mxu0 0
    %1119 = vmatpush1.bf16.msra.mxu0 0
    %1120 = vmatprep.subr.bf16.mxu0 0
    %1121 = vmatpush1.bf16.msra.mxu0 0
    %1122 = vmatprep.mubr.bf16.mxu0 0
    %1123 = vmatmul.mubr.bf16.gmra.mrb[0].mxu0 %v1018
    %v1124 = vpop.f32.mrb[0].mxu0
    %v1125 = vadd.f32 %v1041, %v1124
    %v1126 = vpop.f32.mrb[0].mxu0
    %v1127 = vpop.f32.mrb[0].mxu0
    %v1128 = vpop.f32.mrb[0].mxu0
    %1129 = vdwg.mxu0
    %v1130 = vmax.f32 %v1125, 0.0
    %v1131 = vpack.c.bf16 %v1130, %v1130
    %1132 = vst [vmem:[#allocation2 + $0x20] sm:$0xf] %v1131
    %s1133 = scalar_lea.vmem [#allocation8], 512
    %v1134 = vld [vmem:[%s1133] sm:$0xf]
    %v1135 = vld [vmem:[%s1133 + $0x4] sm:$0xf]
    %v1136 = vld [vmem:[%s1133 + $0x8] sm:$0xf]
    %v1137 = vld [vmem:[%s1133 + $0xc] sm:$0xf]
    %v1138 = vld [vmem:[%s1133 + $0x10] sm:$0xf]
    %v1139 = vld [vmem:[%s1133 + $0x14] sm:$0xf]
    %v1140 = vld [vmem:[%s1133 + $0x18] sm:$0xf]
    %v1141 = vld [vmem:[%s1133 + $0x1c] sm:$0xf]
    %v1142 = vld [vmem:[%s1133 + $0x20] sm:$0xf]
    %v1143 = vld [vmem:[%s1133 + $0x24] sm:$0xf]
    %v1144 = vld [vmem:[%s1133 + $0x28] sm:$0xf]
    %v1145 = vld [vmem:[%s1133 + $0x2c] sm:$0xf]
    %v1146 = vld [vmem:[%s1133 + $0x30] sm:$0xf]
    %v1147 = vld [vmem:[%s1133 + $0x34] sm:$0xf]
    %v1148 = vld [vmem:[%s1133 + $0x38] sm:$0xf]
    %v1149 = vld [vmem:[%s1133 + $0x3c] sm:$0xf]
    %v1150 = vld [vmem:[#allocation9 + $0x8] sm:$0x1]
    %v1151 = vlaneseq
    %v1152 = vshrl.u32 %v1151, 7
    %v1153 = vsub.s32 0, %v1152
    %v1154 = vrot.slane %v1150, %v1153
    %v1171 = vunpack.c.l.b16 %v1134
    %v1172 = vunpack.c.l.b16 %v1135
    %v1173 = vunpack.c.l.b16 %v1136
    %v1174 = vunpack.c.l.b16 %v1137
    %v1175 = vunpack.c.l.b16 %v1138
    %v1176 = vunpack.c.l.b16 %v1139
    %v1177 = vunpack.c.l.b16 %v1140
    %v1178 = vunpack.c.l.b16 %v1141
    %v1179 = vunpack.c.l.b16 %v1142
    %v1180 = vunpack.c.l.b16 %v1143
    %v1181 = vunpack.c.l.b16 %v1144
    %v1182 = vunpack.c.l.b16 %v1145
    %v1183 = vunpack.c.l.b16 %v1146
    %v1184 = vunpack.c.l.b16 %v1147
    %v1185 = vunpack.c.l.b16 %v1148
    %v1186 = vunpack.c.l.b16 %v1149
    %v1187 = vpack.c.b16 %v1172, %v1171
    %v1188 = vpack.c.b16 %v1174, %v1173
    %v1189 = vpack.c.b16 %v1176, %v1175
    %v1190 = vpack.c.b16 %v1178, %v1177
    %v1191 = vpack.c.b16 %v1180, %v1179
    %v1192 = vpack.c.b16 %v1182, %v1181
    %v1193 = vpack.c.b16 %v1184, %v1183
    %v1194 = vpack.c.b16 %v1186, %v1185
    %1203 = vmatprep.subr.bf16.mxu0 0
    %1204 = vmatpush1.bf16.msra.mxu0 %v1187
    %1205 = vmatprep.subr.bf16.mxu0 0
    %1206 = vmatpush1.bf16.msra.mxu0 %v1188
    %1207 = vmatprep.subr.bf16.mxu0 0
    %1208 = vmatpush1.bf16.msra.mxu0 %v1189
    %1209 = vmatprep.subr.bf16.mxu0 0
    %1210 = vmatpush1.bf16.msra.mxu0 %v1190
    %1211 = vmatprep.subr.bf16.mxu0 0
    %1212 = vmatpush1.bf16.msra.mxu0 %v1191
    %1213 = vmatprep.subr.bf16.mxu0 0
    %1214 = vmatpush1.bf16.msra.mxu0 %v1192
    %1215 = vmatprep.subr.bf16.mxu0 0
    %1216 = vmatpush1.bf16.msra.mxu0 %v1193
    %1217 = vmatprep.subr.bf16.mxu0 0
    %1218 = vmatpush1.bf16.msra.mxu0 %v1194
    %1219 = vmatprep.subr.bf16.mxu0 0
    %1220 = vmatpush1.bf16.msra.mxu0 0
    %1221 = vmatprep.subr.bf16.mxu0 0
    %1222 = vmatpush1.bf16.msra.mxu0 0
    %1223 = vmatprep.subr.bf16.mxu0 0
    %1224 = vmatpush1.bf16.msra.mxu0 0
    %1225 = vmatprep.subr.bf16.mxu0 0
    %1226 = vmatpush1.bf16.msra.mxu0 0
    %1227 = vmatprep.subr.bf16.mxu0 0
    %1228 = vmatpush1.bf16.msra.mxu0 0
    %1229 = vmatprep.subr.bf16.mxu0 0
    %1230 = vmatpush1.bf16.msra.mxu0 0
    %1231 = vmatprep.subr.bf16.mxu0 0
    %1232 = vmatpush1.bf16.msra.mxu0 0
    %1233 = vmatprep.subr.bf16.mxu0 0
    %1234 = vmatpush1.bf16.msra.mxu0 0
    %1235 = vmatprep.mubr.bf16.mxu0 0
    %1236 = vmatmul.mubr.bf16.gmra.mrb[0].mxu0 %v1131
    %v1237 = vpop.f32.mrb[0].mxu0
    %v1238 = vadd.f32 %v1154, %v1237
    %v1239 = vpop.f32.mrb[0].mxu0
    %v1240 = vpop.f32.mrb[0].mxu0
    %v1241 = vpop.f32.mrb[0].mxu0
    %1242 = vdwg.mxu0
    %v1243 = vmax.f32 %v1238, 0.0
    %v1244 = vpack.c.bf16 %v1243, %v1243
    %1245 = vst [vmem:[#allocation2 + $0x24] sm:$0xf] %v1244
    %s1246 = scalar_lea.vmem [#allocation8], 576
    %v1247 = vld [vmem:[%s1246] sm:$0xf]
    %v1248 = vld [vmem:[%s1246 + $0x4] sm:$0xf]
    %v1249 = vld [vmem:[%s1246 + $0x8] sm:$0xf]
    %v1250 = vld [vmem:[%s1246 + $0xc] sm:$0xf]
    %v1251 = vld [vmem:[%s1246 + $0x10] sm:$0xf]
    %v1252 = vld [vmem:[%s1246 + $0x14] sm:$0xf]
    %v1253 = vld [vmem:[%s1246 + $0x18] sm:$0xf]
    %v1254 = vld [vmem:[%s1246 + $0x1c] sm:$0xf]
    %v1255 = vld [vmem:[%s1246 + $0x20] sm:$0xf]
    %v1256 = vld [vmem:[%s1246 + $0x24] sm:$0xf]
    %v1257 = vld [vmem:[%s1246 + $0x28] sm:$0xf]
    %v1258 = vld [vmem:[%s1246 + $0x2c] sm:$0xf]
    %v1259 = vld [vmem:[%s1246 + $0x30] sm:$0xf]
    %v1260 = vld [vmem:[%s1246 + $0x34] sm:$0xf]
    %v1261 = vld [vmem:[%s1246 + $0x38] sm:$0xf]
    %v1262 = vld [vmem:[%s1246 + $0x3c] sm:$0xf]
    %v1263 = vld [vmem:[#allocation9 + $0x9] sm:$0x1]
    %v1264 = vlaneseq
    %v1265 = vshrl.u32 %v1264, 7
    %v1266 = vsub.s32 0, %v1265
    %v1267 = vrot.slane %v1263, %v1266
    %v1284 = vunpack.c.l.b16 %v1247
    %v1285 = vunpack.c.l.b16 %v1248
    %v1286 = vunpack.c.l.b16 %v1249
    %v1287 = vunpack.c.l.b16 %v1250
    %v1288 = vunpack.c.l.b16 %v1251
    %v1289 = vunpack.c.l.b16 %v1252
    %v1290 = vunpack.c.l.b16 %v1253
    %v1291 = vunpack.c.l.b16 %v1254
    %v1292 = vunpack.c.l.b16 %v1255
    %v1293 = vunpack.c.l.b16 %v1256
    %v1294 = vunpack.c.l.b16 %v1257
    %v1295 = vunpack.c.l.b16 %v1258
    %v1296 = vunpack.c.l.b16 %v1259
    %v1297 = vunpack.c.l.b16 %v1260
    %v1298 = vunpack.c.l.b16 %v1261
    %v1299 = vunpack.c.l.b16 %v1262
    %v1300 = vpack.c.b16 %v1285, %v1284
    %v1301 = vpack.c.b16 %v1287, %v1286
    %v1302 = vpack.c.b16 %v1289, %v1288
    %v1303 = vpack.c.b16 %v1291, %v1290
    %v1304 = vpack.c.b16 %v1293, %v1292
    %v1305 = vpack.c.b16 %v1295, %v1294
    %v1306 = vpack.c.b16 %v1297, %v1296
    %v1307 = vpack.c.b16 %v1299, %v1298
    %1316 = vmatprep.subr.bf16.mxu0 0
    %1317 = vmatpush1.bf16.msra.mxu0 %v1300
    %1318 = vmatprep.subr.bf16.mxu0 0
    %1319 = vmatpush1.bf16.msra.mxu0 %v1301
    %1320 = vmatprep.subr.bf16.mxu0 0
    %1321 = vmatpush1.bf16.msra.mxu0 %v1302
    %1322 = vmatprep.subr.bf16.mxu0 0
    %1323 = vmatpush1.bf16.msra.mxu0 %v1303
    %1324 = vmatprep.subr.bf16.mxu0 0
    %1325 = vmatpush1.bf16.msra.mxu0 %v1304
    %1326 = vmatprep.subr.bf16.mxu0 0
    %1327 = vmatpush1.bf16.msra.mxu0 %v1305
    %1328 = vmatprep.subr.bf16.mxu0 0
    %1329 = vmatpush1.bf16.msra.mxu0 %v1306
    %1330 = vmatprep.subr.bf16.mxu0 0
    %1331 = vmatpush1.bf16.msra.mxu0 %v1307
    %1332 = vmatprep.subr.bf16.mxu0 0
    %1333 = vmatpush1.bf16.msra.mxu0 0
    %1334 = vmatprep.subr.bf16.mxu0 0
    %1335 = vmatpush1.bf16.msra.mxu0 0
    %1336 = vmatprep.subr.bf16.mxu0 0
    %1337 = vmatpush1.bf16.msra.mxu0 0
    %1338 = vmatprep.subr.bf16.mxu0 0
    %1339 = vmatpush1.bf16.msra.mxu0 0
    %1340 = vmatprep.subr.bf16.mxu0 0
    %1341 = vmatpush1.bf16.msra.mxu0 0
    %1342 = vmatprep.subr.bf16.mxu0 0
    %1343 = vmatpush1.bf16.msra.mxu0 0
    %1344 = vmatprep.subr.bf16.mxu0 0
    %1345 = vmatpush1.bf16.msra.mxu0 0
    %1346 = vmatprep.subr.bf16.mxu0 0
    %1347 = vmatpush1.bf16.msra.mxu0 0
    %1348 = vmatprep.mubr.bf16.mxu0 0
    %1349 = vmatmul.mubr.bf16.gmra.mrb[0].mxu0 %v1244
    %v1350 = vpop.f32.mrb[0].mxu0
    %v1351 = vadd.f32 %v1267, %v1350
    %v1352 = vpop.f32.mrb[0].mxu0
    %v1353 = vpop.f32.mrb[0].mxu0
    %v1354 = vpop.f32.mrb[0].mxu0
    %1355 = vdwg.mxu0
    %v1356 = vmax.f32 %v1351, 0.0
    %v1357 = vpack.c.bf16 %v1356, %v1356
    %1358 = vst [vmem:[#allocation2 + $0x28] sm:$0xf] %v1357
    %v1359 = vld [vmem:[#allocation2] sm:$0xff]
    %v1360 = vld [vmem:[#allocation2 + $0x8] sm:$0xff]
    %v1361 = vld [vmem:[#allocation2 + $0x10] sm:$0xff]
    %v1362 = vld [vmem:[#allocation2 + $0x18] sm:$0xff]
    %v1363 = vld [vmem:[#allocation2 + $0x20] sm:$0xff]
    %v1364 = vld [vmem:[#allocation2 + $0x28] sm:$0xf]
    %v1365 = vld [vmem:[#allocation11] sm:$0xf]
    %v1366 = vld [vmem:[#allocation11 + $0x4] sm:$0xf]
    %v1367 = vld [vmem:[#allocation11 + $0x8] sm:$0xf]
    %v1368 = vld [vmem:[#allocation11 + $0xc] sm:$0xf]
    %v1369 = vld [vmem:[#allocation11 + $0x10] sm:$0xf]
    %v1370 = vld [vmem:[#allocation11 + $0x14] sm:$0xf]
    %v1371 = vld [vmem:[#allocation11 + $0x18] sm:$0xf]
    %v1372 = vld [vmem:[#allocation11 + $0x1c] sm:$0xf]
    %v1373 = vld [vmem:[#allocation11 + $0x20] sm:$0xf]
    %v1374 = vld [vmem:[#allocation11 + $0x24] sm:$0xf]
    %v1375 = vld [vmem:[#allocation11 + $0x28] sm:$0xf]
    %v1376 = vld [vmem:[#allocation11 + $0x2c] sm:$0xf]
    %v1377 = vld [vmem:[#allocation11 + $0x30] sm:$0xf]
    %v1378 = vld [vmem:[#allocation11 + $0x34] sm:$0xf]
    %v1379 = vld [vmem:[#allocation11 + $0x38] sm:$0xf]
    %v1380 = vld [vmem:[#allocation11 + $0x3c] sm:$0xf]
    %v1381 = vld [vmem:[#allocation11 + $0x40] sm:$0xf]
    %v1382 = vld [vmem:[#allocation11 + $0x44] sm:$0xf]
    %v1383 = vld [vmem:[#allocation11 + $0x48] sm:$0xf]
    %v1384 = vld [vmem:[#allocation11 + $0x4c] sm:$0xf]
    %v1385 = vld [vmem:[#allocation11 + $0x50] sm:$0xf]
    %v1386 = vld [vmem:[#allocation11 + $0x54] sm:$0xf]
    %v1387 = vld [vmem:[#allocation11 + $0x58] sm:$0xf]
    %v1388 = vld [vmem:[#allocation11 + $0x5c] sm:$0xf]
    %v1389 = vld [vmem:[#allocation11 + $0x60] sm:$0xf]
    %v1390 = vld [vmem:[#allocation11 + $0x64] sm:$0xf]
    %v1391 = vld [vmem:[#allocation11 + $0x68] sm:$0xf]
    %v1392 = vld [vmem:[#allocation11 + $0x6c] sm:$0xf]
    %v1393 = vld [vmem:[#allocation11 + $0x70] sm:$0xf]
    %v1394 = vld [vmem:[#allocation11 + $0x74] sm:$0xf]
    %v1395 = vld [vmem:[#allocation11 + $0x78] sm:$0xf]
    %v1396 = vld [vmem:[#allocation11 + $0x7c] sm:$0xf]
    %v1397 = vld [vmem:[#allocation11 + $0x80] sm:$0xf]
    %v1398 = vld [vmem:[#allocation11 + $0x84] sm:$0xf]
    %v1399 = vld [vmem:[#allocation11 + $0x88] sm:$0xf]
    %v1400 = vld [vmem:[#allocation11 + $0x8c] sm:$0xf]
    %v1401 = vld [vmem:[#allocation11 + $0x90] sm:$0xf]
    %v1402 = vld [vmem:[#allocation11 + $0x94] sm:$0xf]
    %v1403 = vld [vmem:[#allocation11 + $0x98] sm:$0xf]
    %v1404 = vld [vmem:[#allocation11 + $0x9c] sm:$0xf]
    %v1405 = vld [vmem:[#allocation11 + $0xa0] sm:$0xf]
    %v1406 = vld [vmem:[#allocation11 + $0xa4] sm:$0xf]
    %v1407 = vld [vmem:[#allocation11 + $0xa8] sm:$0xf]
    %v1408 = vld [vmem:[#allocation11 + $0xac] sm:$0xf]
    %v1409 = vld [vmem:[#allocation11 + $0xb0] sm:$0xf]
    %v1410 = vld [vmem:[#allocation11 + $0xb4] sm:$0xf]
    %v1411 = vld [vmem:[#allocation11 + $0xb8] sm:$0xf]
    %v1412 = vld [vmem:[#allocation11 + $0xbc] sm:$0xf]
    %v1413 = vld [vmem:[#allocation11 + $0xc0] sm:$0xf]
    %v1414 = vld [vmem:[#allocation11 + $0xc4] sm:$0xf]
    %v1415 = vld [vmem:[#allocation11 + $0xc8] sm:$0xf]
    %v1416 = vld [vmem:[#allocation11 + $0xcc] sm:$0xf]
    %v1417 = vld [vmem:[#allocation11 + $0xd0] sm:$0xf]
    %v1418 = vld [vmem:[#allocation11 + $0xd4] sm:$0xf]
    %v1419 = vld [vmem:[#allocation11 + $0xd8] sm:$0xf]
    %v1420 = vld [vmem:[#allocation11 + $0xdc] sm:$0xf]
    %v1421 = vld [vmem:[#allocation11 + $0xe0] sm:$0xf]
    %v1422 = vld [vmem:[#allocation11 + $0xe4] sm:$0xf]
    %v1423 = vld [vmem:[#allocation11 + $0xe8] sm:$0xf]
    %v1424 = vld [vmem:[#allocation11 + $0xec] sm:$0xf]
    %v1425 = vld [vmem:[#allocation11 + $0xf0] sm:$0xf]
    %v1426 = vld [vmem:[#allocation11 + $0xf4] sm:$0xf]
    %v1427 = vld [vmem:[#allocation11 + $0xf8] sm:$0xf]
    %v1428 = vld [vmem:[#allocation11 + $0xfc] sm:$0xf]
    %v1429 = vld [vmem:[#allocation11 + $0x100] sm:$0xf]
    %v1430 = vld [vmem:[#allocation11 + $0x104] sm:$0xf]
    %v1431 = vld [vmem:[#allocation11 + $0x108] sm:$0xf]
    %v1432 = vld [vmem:[#allocation11 + $0x10c] sm:$0xf]
    %v1433 = vld [vmem:[#allocation11 + $0x110] sm:$0xf]
    %v1434 = vld [vmem:[#allocation11 + $0x114] sm:$0xf]
    %v1435 = vld [vmem:[#allocation11 + $0x118] sm:$0xf]
    %v1436 = vld [vmem:[#allocation11 + $0x11c] sm:$0xf]
    %v1437 = vld [vmem:[#allocation11 + $0x120] sm:$0xf]
    %v1438 = vld [vmem:[#allocation11 + $0x124] sm:$0xf]
    %v1439 = vld [vmem:[#allocation11 + $0x128] sm:$0xf]
    %v1440 = vld [vmem:[#allocation11 + $0x12c] sm:$0xf]
    %v1441 = vld [vmem:[#allocation11 + $0x130] sm:$0xf]
    %v1442 = vld [vmem:[#allocation11 + $0x134] sm:$0xf]
    %v1443 = vld [vmem:[#allocation11 + $0x138] sm:$0xf]
    %v1444 = vld [vmem:[#allocation11 + $0x13c] sm:$0xf]
    %v1445 = vld [vmem:[#allocation11 + $0x140] sm:$0xf]
    %v1446 = vld [vmem:[#allocation11 + $0x144] sm:$0xf]
    %v1447 = vld [vmem:[#allocation11 + $0x148] sm:$0xf]
    %v1448 = vld [vmem:[#allocation11 + $0x14c] sm:$0xf]
    %v1449 = vld [vmem:[#allocation11 + $0x150] sm:$0xf]
    %v1450 = vld [vmem:[#allocation11 + $0x154] sm:$0xf]
    %v1451 = vld [vmem:[#allocation11 + $0x158] sm:$0xf]
    %v1452 = vld [vmem:[#allocation11 + $0x15c] sm:$0xf]
    %v1453 = vld [vmem:[#allocation11 + $0x160] sm:$0xf]
    %v1454 = vld [vmem:[#allocation11 + $0x164] sm:$0xf]
    %v1455 = vld [vmem:[#allocation11 + $0x168] sm:$0xf]
    %v1456 = vld [vmem:[#allocation11 + $0x16c] sm:$0xf]
    %v1457 = vld [vmem:[#allocation11 + $0x170] sm:$0xf]
    %v1458 = vld [vmem:[#allocation11 + $0x174] sm:$0xf]
    %v1459 = vld [vmem:[#allocation11 + $0x178] sm:$0xf]
    %v1460 = vld [vmem:[#allocation11 + $0x17c] sm:$0xf]
    %v1461 = vld [vmem:[#allocation11 + $0x180] sm:$0xf]
    %v1462 = vld [vmem:[#allocation11 + $0x184] sm:$0xf]
    %v1463 = vld [vmem:[#allocation11 + $0x188] sm:$0xf]
    %v1464 = vld [vmem:[#allocation11 + $0x18c] sm:$0xf]
    %v1465 = vld [vmem:[#allocation11 + $0x190] sm:$0xf]
    %v1466 = vld [vmem:[#allocation11 + $0x194] sm:$0xf]
    %v1467 = vld [vmem:[#allocation11 + $0x198] sm:$0xf]
    %v1468 = vld [vmem:[#allocation11 + $0x19c] sm:$0xf]
    %v1469 = vld [vmem:[#allocation11 + $0x1a0] sm:$0xf]
    %v1470 = vld [vmem:[#allocation11 + $0x1a4] sm:$0xf]
    %v1471 = vld [vmem:[#allocation11 + $0x1a8] sm:$0xf]
    %v1472 = vld [vmem:[#allocation11 + $0x1ac] sm:$0xf]
    %v1473 = vld [vmem:[#allocation11 + $0x1b0] sm:$0xf]
    %v1474 = vld [vmem:[#allocation11 + $0x1b4] sm:$0xf]
    %v1475 = vld [vmem:[#allocation11 + $0x1b8] sm:$0xf]
    %v1476 = vld [vmem:[#allocation11 + $0x1bc] sm:$0xf]
    %v1477 = vld [vmem:[#allocation11 + $0x1c0] sm:$0xf]
    %v1478 = vld [vmem:[#allocation11 + $0x1c4] sm:$0xf]
    %v1479 = vld [vmem:[#allocation11 + $0x1c8] sm:$0xf]
    %v1480 = vld [vmem:[#allocation11 + $0x1cc] sm:$0xf]
    %v1481 = vld [vmem:[#allocation11 + $0x1d0] sm:$0xf]
    %v1482 = vld [vmem:[#allocation11 + $0x1d4] sm:$0xf]
    %v1483 = vld [vmem:[#allocation11 + $0x1d8] sm:$0xf]
    %v1484 = vld [vmem:[#allocation11 + $0x1dc] sm:$0xf]
    %v1485 = vld [vmem:[#allocation11 + $0x1e0] sm:$0xf]
    %v1486 = vld [vmem:[#allocation11 + $0x1e4] sm:$0xf]
    %v1487 = vld [vmem:[#allocation11 + $0x1e8] sm:$0xf]
    %v1488 = vld [vmem:[#allocation11 + $0x1ec] sm:$0xf]
    %v1489 = vld [vmem:[#allocation11 + $0x1f0] sm:$0xf]
    %v1490 = vld [vmem:[#allocation11 + $0x1f4] sm:$0xf]
    %v1491 = vld [vmem:[#allocation11 + $0x1f8] sm:$0xf]
    %v1492 = vld [vmem:[#allocation11 + $0x1fc] sm:$0xf]
    %v1493 = vld [vmem:[#allocation11 + $0x200] sm:$0xf]
    %v1494 = vld [vmem:[#allocation11 + $0x204] sm:$0xf]
    %v1495 = vld [vmem:[#allocation11 + $0x208] sm:$0xf]
    %v1496 = vld [vmem:[#allocation11 + $0x20c] sm:$0xf]
    %v1497 = vld [vmem:[#allocation11 + $0x210] sm:$0xf]
    %v1498 = vld [vmem:[#allocation11 + $0x214] sm:$0xf]
    %v1499 = vld [vmem:[#allocation11 + $0x218] sm:$0xf]
    %v1500 = vld [vmem:[#allocation11 + $0x21c] sm:$0xf]
    %v1501 = vld [vmem:[#allocation11 + $0x220] sm:$0xf]
    %v1502 = vld [vmem:[#allocation11 + $0x224] sm:$0xf]
    %v1503 = vld [vmem:[#allocation11 + $0x228] sm:$0xf]
    %v1504 = vld [vmem:[#allocation11 + $0x22c] sm:$0xf]
    %v1505 = vld [vmem:[#allocation11 + $0x230] sm:$0xf]
    %v1506 = vld [vmem:[#allocation11 + $0x234] sm:$0xf]
    %v1507 = vld [vmem:[#allocation11 + $0x238] sm:$0xf]
    %v1508 = vld [vmem:[#allocation11 + $0x23c] sm:$0xf]
    %v1509 = vld [vmem:[#allocation11 + $0x240] sm:$0xf]
    %v1510 = vld [vmem:[#allocation11 + $0x244] sm:$0xf]
    %v1511 = vld [vmem:[#allocation11 + $0x248] sm:$0xf]
    %v1512 = vld [vmem:[#allocation11 + $0x24c] sm:$0xf]
    %v1513 = vld [vmem:[#allocation11 + $0x250] sm:$0xf]
    %v1514 = vld [vmem:[#allocation11 + $0x254] sm:$0xf]
    %v1515 = vld [vmem:[#allocation11 + $0x258] sm:$0xf]
    %v1516 = vld [vmem:[#allocation11 + $0x25c] sm:$0xf]
    %v1517 = vld [vmem:[#allocation11 + $0x260] sm:$0xf]
    %v1518 = vld [vmem:[#allocation11 + $0x264] sm:$0xf]
    %v1519 = vld [vmem:[#allocation11 + $0x268] sm:$0xf]
    %v1520 = vld [vmem:[#allocation11 + $0x26c] sm:$0xf]
    %v1521 = vld [vmem:[#allocation11 + $0x270] sm:$0xf]
    %v1522 = vld [vmem:[#allocation11 + $0x274] sm:$0xf]
    %v1523 = vld [vmem:[#allocation11 + $0x278] sm:$0xf]
    %v1524 = vld [vmem:[#allocation11 + $0x27c] sm:$0xf]
    %v1525 = vld [vmem:[#allocation11 + $0x280] sm:$0xf]
    %v1526 = vld [vmem:[#allocation11 + $0x284] sm:$0xf]
    %v1527 = vld [vmem:[#allocation11 + $0x288] sm:$0xf]
    %v1528 = vld [vmem:[#allocation11 + $0x28c] sm:$0xf]
    %v1529 = vld [vmem:[#allocation11 + $0x290] sm:$0xf]
    %v1530 = vld [vmem:[#allocation11 + $0x294] sm:$0xf]
    %v1531 = vld [vmem:[#allocation11 + $0x298] sm:$0xf]
    %v1532 = vld [vmem:[#allocation11 + $0x29c] sm:$0xf]
    %v1533 = vld [vmem:[#allocation11 + $0x2a0] sm:$0xf]
    %v1534 = vld [vmem:[#allocation11 + $0x2a4] sm:$0xf]
    %v1535 = vld [vmem:[#allocation11 + $0x2a8] sm:$0xf]
    %v1536 = vld [vmem:[#allocation11 + $0x2ac] sm:$0xf]
    %v1537 = vld [vmem:[#allocation11 + $0x2b0] sm:$0xf]
    %v1538 = vld [vmem:[#allocation11 + $0x2b4] sm:$0xf]
    %v1539 = vld [vmem:[#allocation11 + $0x2b8] sm:$0xf]
    %v1540 = vld [vmem:[#allocation11 + $0x2bc] sm:$0xf]
    %v1541 = vld [vmem:[%s6] sm:$0x1]
    %v1543 = vlaneseq
    %v1544 = vshrl.u32 %v1543, 7
    %v1545 = vsub.s32 0, %v1544
    %v1546 = vrot.slane %v1541, %v1545
    %v1554 = vunpack.c.l.b16 %v1359
    %v1555 = vunpack.c.h.b16 %v1359
    %v1556 = vunpack.c.l.b16 %v1360
    %v1557 = vunpack.c.h.b16 %v1360
    %v1558 = vunpack.c.l.b16 %v1361
    %v1559 = vunpack.c.h.b16 %v1361
    %v1560 = vunpack.c.l.b16 %v1362
    %v1561 = vunpack.c.h.b16 %v1362
    %v1562 = vunpack.c.l.b16 %v1363
    %v1563 = vunpack.c.h.b16 %v1363
    %v1564 = vunpack.c.l.b16 %v1364
    %v1565 = vpack.c.b16 %v1554, %v1554
    %v1566 = vpack.c.b16 %v1555, %v1555
    %v1567 = vpack.c.b16 %v1556, %v1556
    %v1568 = vpack.c.b16 %v1557, %v1557
    %v1569 = vpack.c.b16 %v1558, %v1558
    %v1570 = vpack.c.b16 %v1559, %v1559
    %v1571 = vpack.c.b16 %v1560, %v1560
    %v1572 = vpack.c.b16 %v1561, %v1561
    %v1573 = vpack.c.b16 %v1562, %v1562
    %v1574 = vpack.c.b16 %v1563, %v1563
    %v1575 = vpack.c.b16 %v1564, %v1564
    %v1763 = vunpack.c.l.b16 %v1365
    %v1764 = vunpack.c.l.b16 %v1366
    %v1765 = vunpack.c.l.b16 %v1367
    %v1766 = vunpack.c.l.b16 %v1368
    %v1767 = vunpack.c.l.b16 %v1369
    %v1768 = vunpack.c.l.b16 %v1370
    %v1769 = vunpack.c.l.b16 %v1371
    %v1770 = vunpack.c.l.b16 %v1372
    %v1771 = vunpack.c.l.b16 %v1373
    %v1772 = vunpack.c.l.b16 %v1374
    %v1773 = vunpack.c.l.b16 %v1375
    %v1774 = vunpack.c.l.b16 %v1376
    %v1775 = vunpack.c.l.b16 %v1377
    %v1776 = vunpack.c.l.b16 %v1378
    %v1777 = vunpack.c.l.b16 %v1379
    %v1778 = vunpack.c.l.b16 %v1380
    %v1779 = vunpack.c.l.b16 %v1381
    %v1780 = vunpack.c.l.b16 %v1382
    %v1781 = vunpack.c.l.b16 %v1383
    %v1782 = vunpack.c.l.b16 %v1384
    %v1783 = vunpack.c.l.b16 %v1385
    %v1784 = vunpack.c.l.b16 %v1386
    %v1785 = vunpack.c.l.b16 %v1387
    %v1786 = vunpack.c.l.b16 %v1388
    %v1787 = vunpack.c.l.b16 %v1389
    %v1788 = vunpack.c.l.b16 %v1390
    %v1789 = vunpack.c.l.b16 %v1391
    %v1790 = vunpack.c.l.b16 %v1392
    %v1791 = vunpack.c.l.b16 %v1393
    %v1792 = vunpack.c.l.b16 %v1394
    %v1793 = vunpack.c.l.b16 %v1395
    %v1794 = vunpack.c.l.b16 %v1396
    %v1795 = vunpack.c.l.b16 %v1397
    %v1796 = vunpack.c.l.b16 %v1398
    %v1797 = vunpack.c.l.b16 %v1399
    %v1798 = vunpack.c.l.b16 %v1400
    %v1799 = vunpack.c.l.b16 %v1401
    %v1800 = vunpack.c.l.b16 %v1402
    %v1801 = vunpack.c.l.b16 %v1403
    %v1802 = vunpack.c.l.b16 %v1404
    %v1803 = vunpack.c.l.b16 %v1405
    %v1804 = vunpack.c.l.b16 %v1406
    %v1805 = vunpack.c.l.b16 %v1407
    %v1806 = vunpack.c.l.b16 %v1408
    %v1807 = vunpack.c.l.b16 %v1409
    %v1808 = vunpack.c.l.b16 %v1410
    %v1809 = vunpack.c.l.b16 %v1411
    %v1810 = vunpack.c.l.b16 %v1412
    %v1811 = vunpack.c.l.b16 %v1413
    %v1812 = vunpack.c.l.b16 %v1414
    %v1813 = vunpack.c.l.b16 %v1415
    %v1814 = vunpack.c.l.b16 %v1416
    %v1815 = vunpack.c.l.b16 %v1417
    %v1816 = vunpack.c.l.b16 %v1418
    %v1817 = vunpack.c.l.b16 %v1419
    %v1818 = vunpack.c.l.b16 %v1420
    %v1819 = vunpack.c.l.b16 %v1421
    %v1820 = vunpack.c.l.b16 %v1422
    %v1821 = vunpack.c.l.b16 %v1423
    %v1822 = vunpack.c.l.b16 %v1424
    %v1823 = vunpack.c.l.b16 %v1425
    %v1824 = vunpack.c.l.b16 %v1426
    %v1825 = vunpack.c.l.b16 %v1427
    %v1826 = vunpack.c.l.b16 %v1428
    %v1827 = vunpack.c.l.b16 %v1429
    %v1828 = vunpack.c.l.b16 %v1430
    %v1829 = vunpack.c.l.b16 %v1431
    %v1830 = vunpack.c.l.b16 %v1432
    %v1831 = vunpack.c.l.b16 %v1433
    %v1832 = vunpack.c.l.b16 %v1434
    %v1833 = vunpack.c.l.b16 %v1435
    %v1834 = vunpack.c.l.b16 %v1436
    %v1835 = vunpack.c.l.b16 %v1437
    %v1836 = vunpack.c.l.b16 %v1438
    %v1837 = vunpack.c.l.b16 %v1439
    %v1838 = vunpack.c.l.b16 %v1440
    %v1839 = vunpack.c.l.b16 %v1441
    %v1840 = vunpack.c.l.b16 %v1442
    %v1841 = vunpack.c.l.b16 %v1443
    %v1842 = vunpack.c.l.b16 %v1444
    %v1843 = vunpack.c.l.b16 %v1445
    %v1844 = vunpack.c.l.b16 %v1446
    %v1845 = vunpack.c.l.b16 %v1447
    %v1846 = vunpack.c.l.b16 %v1448
    %v1847 = vunpack.c.l.b16 %v1449
    %v1848 = vunpack.c.l.b16 %v1450
    %v1849 = vunpack.c.l.b16 %v1451
    %v1850 = vunpack.c.l.b16 %v1452
    %v1851 = vunpack.c.l.b16 %v1453
    %v1852 = vunpack.c.l.b16 %v1454
    %v1853 = vunpack.c.l.b16 %v1455
    %v1854 = vunpack.c.l.b16 %v1456
    %v1855 = vunpack.c.l.b16 %v1457
    %v1856 = vunpack.c.l.b16 %v1458
    %v1857 = vunpack.c.l.b16 %v1459
    %v1858 = vunpack.c.l.b16 %v1460
    %v1859 = vunpack.c.l.b16 %v1461
    %v1860 = vunpack.c.l.b16 %v1462
    %v1861 = vunpack.c.l.b16 %v1463
    %v1862 = vunpack.c.l.b16 %v1464
    %v1863 = vunpack.c.l.b16 %v1465
    %v1864 = vunpack.c.l.b16 %v1466
    %v1865 = vunpack.c.l.b16 %v1467
    %v1866 = vunpack.c.l.b16 %v1468
    %v1867 = vunpack.c.l.b16 %v1469
    %v1868 = vunpack.c.l.b16 %v1470
    %v1869 = vunpack.c.l.b16 %v1471
    %v1870 = vunpack.c.l.b16 %v1472
    %v1871 = vunpack.c.l.b16 %v1473
    %v1872 = vunpack.c.l.b16 %v1474
    %v1873 = vunpack.c.l.b16 %v1475
    %v1874 = vunpack.c.l.b16 %v1476
    %v1875 = vunpack.c.l.b16 %v1477
    %v1876 = vunpack.c.l.b16 %v1478
    %v1877 = vunpack.c.l.b16 %v1479
    %v1878 = vunpack.c.l.b16 %v1480
    %v1879 = vunpack.c.l.b16 %v1481
    %v1880 = vunpack.c.l.b16 %v1482
    %v1881 = vunpack.c.l.b16 %v1483
    %v1882 = vunpack.c.l.b16 %v1484
    %v1883 = vunpack.c.l.b16 %v1485
    %v1884 = vunpack.c.l.b16 %v1486
    %v1885 = vunpack.c.l.b16 %v1487
    %v1886 = vunpack.c.l.b16 %v1488
    %v1887 = vunpack.c.l.b16 %v1489
    %v1888 = vunpack.c.l.b16 %v1490
    %v1889 = vunpack.c.l.b16 %v1491
    %v1890 = vunpack.c.l.b16 %v1492
    %v1891 = vunpack.c.l.b16 %v1493
    %v1892 = vunpack.c.l.b16 %v1494
    %v1893 = vunpack.c.l.b16 %v1495
    %v1894 = vunpack.c.l.b16 %v1496
    %v1895 = vunpack.c.l.b16 %v1497
    %v1896 = vunpack.c.l.b16 %v1498
    %v1897 = vunpack.c.l.b16 %v1499
    %v1898 = vunpack.c.l.b16 %v1500
    %v1899 = vunpack.c.l.b16 %v1501
    %v1900 = vunpack.c.l.b16 %v1502
    %v1901 = vunpack.c.l.b16 %v1503
    %v1902 = vunpack.c.l.b16 %v1504
    %v1903 = vunpack.c.l.b16 %v1505
    %v1904 = vunpack.c.l.b16 %v1506
    %v1905 = vunpack.c.l.b16 %v1507
    %v1906 = vunpack.c.l.b16 %v1508
    %v1907 = vunpack.c.l.b16 %v1509
    %v1908 = vunpack.c.l.b16 %v1510
    %v1909 = vunpack.c.l.b16 %v1511
    %v1910 = vunpack.c.l.b16 %v1512
    %v1911 = vunpack.c.l.b16 %v1513
    %v1912 = vunpack.c.l.b16 %v1514
    %v1913 = vunpack.c.l.b16 %v1515
    %v1914 = vunpack.c.l.b16 %v1516
    %v1915 = vunpack.c.l.b16 %v1517
    %v1916 = vunpack.c.l.b16 %v1518
    %v1917 = vunpack.c.l.b16 %v1519
    %v1918 = vunpack.c.l.b16 %v1520
    %v1919 = vunpack.c.l.b16 %v1521
    %v1920 = vunpack.c.l.b16 %v1522
    %v1921 = vunpack.c.l.b16 %v1523
    %v1922 = vunpack.c.l.b16 %v1524
    %v1923 = vunpack.c.l.b16 %v1525
    %v1924 = vunpack.c.l.b16 %v1526
    %v1925 = vunpack.c.l.b16 %v1527
    %v1926 = vunpack.c.l.b16 %v1528
    %v1927 = vunpack.c.l.b16 %v1529
    %v1928 = vunpack.c.l.b16 %v1530
    %v1929 = vunpack.c.l.b16 %v1531
    %v1930 = vunpack.c.l.b16 %v1532
    %v1931 = vunpack.c.l.b16 %v1533
    %v1932 = vunpack.c.l.b16 %v1534
    %v1933 = vunpack.c.l.b16 %v1535
    %v1934 = vunpack.c.l.b16 %v1536
    %v1935 = vunpack.c.l.b16 %v1537
    %v1936 = vunpack.c.l.b16 %v1538
    %v1937 = vunpack.c.l.b16 %v1539
    %v1938 = vunpack.c.l.b16 %v1540
    %v1939 = vpack.c.b16 %v1764, %v1763
    %v1940 = vpack.c.b16 %v1766, %v1765
    %v1941 = vpack.c.b16 %v1768, %v1767
    %v1942 = vpack.c.b16 %v1770, %v1769
    %v1943 = vpack.c.b16 %v1772, %v1771
    %v1944 = vpack.c.b16 %v1774, %v1773
    %v1945 = vpack.c.b16 %v1776, %v1775
    %v1946 = vpack.c.b16 %v1778, %v1777
    %v1947 = vpack.c.b16 %v1780, %v1779
    %v1948 = vpack.c.b16 %v1782, %v1781
    %v1949 = vpack.c.b16 %v1784, %v1783
    %v1950 = vpack.c.b16 %v1786, %v1785
    %v1951 = vpack.c.b16 %v1788, %v1787
    %v1952 = vpack.c.b16 %v1790, %v1789
    %v1953 = vpack.c.b16 %v1792, %v1791
    %v1954 = vpack.c.b16 %v1794, %v1793
    %v1955 = vpack.c.b16 %v1796, %v1795
    %v1956 = vpack.c.b16 %v1798, %v1797
    %v1957 = vpack.c.b16 %v1800, %v1799
    %v1958 = vpack.c.b16 %v1802, %v1801
    %v1959 = vpack.c.b16 %v1804, %v1803
    %v1960 = vpack.c.b16 %v1806, %v1805
    %v1961 = vpack.c.b16 %v1808, %v1807
    %v1962 = vpack.c.b16 %v1810, %v1809
    %v1963 = vpack.c.b16 %v1812, %v1811
    %v1964 = vpack.c.b16 %v1814, %v1813
    %v1965 = vpack.c.b16 %v1816, %v1815
    %v1966 = vpack.c.b16 %v1818, %v1817
    %v1967 = vpack.c.b16 %v1820, %v1819
    %v1968 = vpack.c.b16 %v1822, %v1821
    %v1969 = vpack.c.b16 %v1824, %v1823
    %v1970 = vpack.c.b16 %v1826, %v1825
    %v1971 = vpack.c.b16 %v1828, %v1827
    %v1972 = vpack.c.b16 %v1830, %v1829
    %v1973 = vpack.c.b16 %v1832, %v1831
    %v1974 = vpack.c.b16 %v1834, %v1833
    %v1975 = vpack.c.b16 %v1836, %v1835
    %v1976 = vpack.c.b16 %v1838, %v1837
    %v1977 = vpack.c.b16 %v1840, %v1839
    %v1978 = vpack.c.b16 %v1842, %v1841
    %v1979 = vpack.c.b16 %v1844, %v1843
    %v1980 = vpack.c.b16 %v1846, %v1845
    %v1981 = vpack.c.b16 %v1848, %v1847
    %v1982 = vpack.c.b16 %v1850, %v1849
    %v1983 = vpack.c.b16 %v1852, %v1851
    %v1984 = vpack.c.b16 %v1854, %v1853
    %v1985 = vpack.c.b16 %v1856, %v1855
    %v1986 = vpack.c.b16 %v1858, %v1857
    %v1987 = vpack.c.b16 %v1860, %v1859
    %v1988 = vpack.c.b16 %v1862, %v1861
    %v1989 = vpack.c.b16 %v1864, %v1863
    %v1990 = vpack.c.b16 %v1866, %v1865
    %v1991 = vpack.c.b16 %v1868, %v1867
    %v1992 = vpack.c.b16 %v1870, %v1869
    %v1993 = vpack.c.b16 %v1872, %v1871
    %v1994 = vpack.c.b16 %v1874, %v1873
    %v1995 = vpack.c.b16 %v1876, %v1875
    %v1996 = vpack.c.b16 %v1878, %v1877
    %v1997 = vpack.c.b16 %v1880, %v1879
    %v1998 = vpack.c.b16 %v1882, %v1881
    %v1999 = vpack.c.b16 %v1884, %v1883
    %v2000 = vpack.c.b16 %v1886, %v1885
    %v2001 = vpack.c.b16 %v1888, %v1887
    %v2002 = vpack.c.b16 %v1890, %v1889
    %v2003 = vpack.c.b16 %v1892, %v1891
    %v2004 = vpack.c.b16 %v1894, %v1893
    %v2005 = vpack.c.b16 %v1896, %v1895
    %v2006 = vpack.c.b16 %v1898, %v1897
    %v2007 = vpack.c.b16 %v1900, %v1899
    %v2008 = vpack.c.b16 %v1902, %v1901
    %v2009 = vpack.c.b16 %v1904, %v1903
    %v2010 = vpack.c.b16 %v1906, %v1905
    %v2011 = vpack.c.b16 %v1908, %v1907
    %v2012 = vpack.c.b16 %v1910, %v1909
    %v2013 = vpack.c.b16 %v1912, %v1911
    %v2014 = vpack.c.b16 %v1914, %v1913
    %v2015 = vpack.c.b16 %v1916, %v1915
    %v2016 = vpack.c.b16 %v1918, %v1917
    %v2017 = vpack.c.b16 %v1920, %v1919
    %v2018 = vpack.c.b16 %v1922, %v1921
    %v2019 = vpack.c.b16 %v1924, %v1923
    %v2020 = vpack.c.b16 %v1926, %v1925
    %v2021 = vpack.c.b16 %v1928, %v1927
    %v2022 = vpack.c.b16 %v1930, %v1929
    %v2023 = vpack.c.b16 %v1932, %v1931
    %v2024 = vpack.c.b16 %v1934, %v1933
    %v2025 = vpack.c.b16 %v1936, %v1935
    %v2026 = vpack.c.b16 %v1938, %v1937
    %2115 = vmatprep.subr.bf16.mxu0 0
    %2116 = vmatpush1.bf16.msra.mxu0 %v1939
    %2117 = vmatprep.subr.bf16.mxu0 0
    %2118 = vmatpush1.bf16.msra.mxu0 %v1940
    %2119 = vmatprep.subr.bf16.mxu0 0
    %2120 = vmatpush1.bf16.msra.mxu0 %v1941
    %2121 = vmatprep.subr.bf16.mxu0 0
    %2122 = vmatpush1.bf16.msra.mxu0 %v1942
    %2123 = vmatprep.subr.bf16.mxu0 0
    %2124 = vmatpush1.bf16.msra.mxu0 %v1943
    %2125 = vmatprep.subr.bf16.mxu0 0
    %2126 = vmatpush1.bf16.msra.mxu0 %v1944
    %2127 = vmatprep.subr.bf16.mxu0 0
    %2128 = vmatpush1.bf16.msra.mxu0 %v1945
    %2129 = vmatprep.subr.bf16.mxu0 0
    %2130 = vmatpush1.bf16.msra.mxu0 %v1946
    %2131 = vmatprep.subr.bf16.mxu0 0
    %2132 = vmatpush1.bf16.msra.mxu0 %v1947
    %2133 = vmatprep.subr.bf16.mxu0 0
    %2134 = vmatpush1.bf16.msra.mxu0 %v1948
    %2135 = vmatprep.subr.bf16.mxu0 0
    %2136 = vmatpush1.bf16.msra.mxu0 %v1949
    %2137 = vmatprep.subr.bf16.mxu0 0
    %2138 = vmatpush1.bf16.msra.mxu0 %v1950
    %2139 = vmatprep.subr.bf16.mxu0 0
    %2140 = vmatpush1.bf16.msra.mxu0 %v1951
    %2141 = vmatprep.subr.bf16.mxu0 0
    %2142 = vmatpush1.bf16.msra.mxu0 %v1952
    %2143 = vmatprep.subr.bf16.mxu0 0
    %2144 = vmatpush1.bf16.msra.mxu0 %v1953
    %2145 = vmatprep.subr.bf16.mxu0 0
    %2146 = vmatpush1.bf16.msra.mxu0 %v1954
    %2147 = vmatprep.mubr.bf16.mxu0 %v1566
    %2148 = vmatmul.mubr.bf16.gmra.mrb[0].mxu0 %v1565
    %v2149 = vpop.f32.mrb[0].mxu0
    %v2150 = vadd.f32 %v1546, %v2149
    %v2151 = vpop.f32.mrb[0].mxu0
    %v2152 = vpop.f32.mrb[0].mxu0
    %v2153 = vpop.f32.mrb[0].mxu0
    %2154 = vdwg.mxu0
    %2155 = vmatprep.subr.bf16.mxu0 0
    %2156 = vmatpush1.bf16.msra.mxu0 %v1955
    %2157 = vmatprep.subr.bf16.mxu0 0
    %2158 = vmatpush1.bf16.msra.mxu0 %v1956
    %2159 = vmatprep.subr.bf16.mxu0 0
    %2160 = vmatpush1.bf16.msra.mxu0 %v1957
    %2161 = vmatprep.subr.bf16.mxu0 0
    %2162 = vmatpush1.bf16.msra.mxu0 %v1958
    %2163 = vmatprep.subr.bf16.mxu0 0
    %2164 = vmatpush1.bf16.msra.mxu0 %v1959
    %2165 = vmatprep.subr.bf16.mxu0 0
    %2166 = vmatpush1.bf16.msra.mxu0 %v1960
    %2167 = vmatprep.subr.bf16.mxu0 0
    %2168 = vmatpush1.bf16.msra.mxu0 %v1961
    %2169 = vmatprep.subr.bf16.mxu0 0
    %2170 = vmatpush1.bf16.msra.mxu0 %v1962
    %2171 = vmatprep.subr.bf16.mxu0 0
    %2172 = vmatpush1.bf16.msra.mxu0 %v1963
    %2173 = vmatprep.subr.bf16.mxu0 0
    %2174 = vmatpush1.bf16.msra.mxu0 %v1964
    %2175 = vmatprep.subr.bf16.mxu0 0
    %2176 = vmatpush1.bf16.msra.mxu0 %v1965
    %2177 = vmatprep.subr.bf16.mxu0 0
    %2178 = vmatpush1.bf16.msra.mxu0 %v1966
    %2179 = vmatprep.subr.bf16.mxu0 0
    %2180 = vmatpush1.bf16.msra.mxu0 %v1967
    %2181 = vmatprep.subr.bf16.mxu0 0
    %2182 = vmatpush1.bf16.msra.mxu0 %v1968
    %2183 = vmatprep.subr.bf16.mxu0 0
    %2184 = vmatpush1.bf16.msra.mxu0 %v1969
    %2185 = vmatprep.subr.bf16.mxu0 0
    %2186 = vmatpush1.bf16.msra.mxu0 %v1970
    %2187 = vmatprep.mubr.bf16.mxu0 %v1568
    %2188 = vmatmul.mubr.bf16.gmra.mrb[0].mxu0 %v1567
    %v2189 = vpop.f32.mrb[0].mxu0
    %v2190 = vadd.f32 %v2150, %v2189
    %v2191 = vpop.f32.mrb[0].mxu0
    %v2192 = vpop.f32.mrb[0].mxu0
    %v2193 = vpop.f32.mrb[0].mxu0
    %2194 = vdwg.mxu0
    %2195 = vmatprep.subr.bf16.mxu0 0
    %2196 = vmatpush1.bf16.msra.mxu0 %v1971
    %2197 = vmatprep.subr.bf16.mxu0 0
    %2198 = vmatpush1.bf16.msra.mxu0 %v1972
    %2199 = vmatprep.subr.bf16.mxu0 0
    %2200 = vmatpush1.bf16.msra.mxu0 %v1973
    %2201 = vmatprep.subr.bf16.mxu0 0
    %2202 = vmatpush1.bf16.msra.mxu0 %v1974
    %2203 = vmatprep.subr.bf16.mxu0 0
    %2204 = vmatpush1.bf16.msra.mxu0 %v1975
    %2205 = vmatprep.subr.bf16.mxu0 0
    %2206 = vmatpush1.bf16.msra.mxu0 %v1976
    %2207 = vmatprep.subr.bf16.mxu0 0
    %2208 = vmatpush1.bf16.msra.mxu0 %v1977
    %2209 = vmatprep.subr.bf16.mxu0 0
    %2210 = vmatpush1.bf16.msra.mxu0 %v1978
    %2211 = vmatprep.subr.bf16.mxu0 0
    %2212 = vmatpush1.bf16.msra.mxu0 %v1979
    %2213 = vmatprep.subr.bf16.mxu0 0
    %2214 = vmatpush1.bf16.msra.mxu0 %v1980
    %2215 = vmatprep.subr.bf16.mxu0 0
    %2216 = vmatpush1.bf16.msra.mxu0 %v1981
    %2217 = vmatprep.subr.bf16.mxu0 0
    %2218 = vmatpush1.bf16.msra.mxu0 %v1982
    %2219 = vmatprep.subr.bf16.mxu0 0
    %2220 = vmatpush1.bf16.msra.mxu0 %v1983
    %2221 = vmatprep.subr.bf16.mxu0 0
    %2222 = vmatpush1.bf16.msra.mxu0 %v1984
    %2223 = vmatprep.subr.bf16.mxu0 0
    %2224 = vmatpush1.bf16.msra.mxu0 %v1985
    %2225 = vmatprep.subr.bf16.mxu0 0
    %2226 = vmatpush1.bf16.msra.mxu0 %v1986
    %2227 = vmatprep.mubr.bf16.mxu0 %v1570
    %2228 = vmatmul.mubr.bf16.gmra.mrb[0].mxu0 %v1569
    %v2229 = vpop.f32.mrb[0].mxu0
    %v2230 = vadd.f32 %v2190, %v2229
    %v2231 = vpop.f32.mrb[0].mxu0
    %v2232 = vpop.f32.mrb[0].mxu0
    %v2233 = vpop.f32.mrb[0].mxu0
    %2234 = vdwg.mxu0
    %2235 = vmatprep.subr.bf16.mxu0 0
    %2236 = vmatpush1.bf16.msra.mxu0 %v1987
    %2237 = vmatprep.subr.bf16.mxu0 0
    %2238 = vmatpush1.bf16.msra.mxu0 %v1988
    %2239 = vmatprep.subr.bf16.mxu0 0
    %2240 = vmatpush1.bf16.msra.mxu0 %v1989
    %2241 = vmatprep.subr.bf16.mxu0 0
    %2242 = vmatpush1.bf16.msra.mxu0 %v1990
    %2243 = vmatprep.subr.bf16.mxu0 0
    %2244 = vmatpush1.bf16.msra.mxu0 %v1991
    %2245 = vmatprep.subr.bf16.mxu0 0
    %2246 = vmatpush1.bf16.msra.mxu0 %v1992
    %2247 = vmatprep.subr.bf16.mxu0 0
    %2248 = vmatpush1.bf16.msra.mxu0 %v1993
    %2249 = vmatprep.subr.bf16.mxu0 0
    %2250 = vmatpush1.bf16.msra.mxu0 %v1994
    %2251 = vmatprep.subr.bf16.mxu0 0
    %2252 = vmatpush1.bf16.msra.mxu0 %v1995
    %2253 = vmatprep.subr.bf16.mxu0 0
    %2254 = vmatpush1.bf16.msra.mxu0 %v1996
    %2255 = vmatprep.subr.bf16.mxu0 0
    %2256 = vmatpush1.bf16.msra.mxu0 %v1997
    %2257 = vmatprep.subr.bf16.mxu0 0
    %2258 = vmatpush1.bf16.msra.mxu0 %v1998
    %2259 = vmatprep.subr.bf16.mxu0 0
    %2260 = vmatpush1.bf16.msra.mxu0 %v1999
    %2261 = vmatprep.subr.bf16.mxu0 0
    %2262 = vmatpush1.bf16.msra.mxu0 %v2000
    %2263 = vmatprep.subr.bf16.mxu0 0
    %2264 = vmatpush1.bf16.msra.mxu0 %v2001
    %2265 = vmatprep.subr.bf16.mxu0 0
    %2266 = vmatpush1.bf16.msra.mxu0 %v2002
    %2267 = vmatprep.mubr.bf16.mxu0 %v1572
    %2268 = vmatmul.mubr.bf16.gmra.mrb[0].mxu0 %v1571
    %v2269 = vpop.f32.mrb[0].mxu0
    %v2270 = vadd.f32 %v2230, %v2269
    %v2271 = vpop.f32.mrb[0].mxu0
    %v2272 = vpop.f32.mrb[0].mxu0
    %v2273 = vpop.f32.mrb[0].mxu0
    %2274 = vdwg.mxu0
    %2275 = vmatprep.subr.bf16.mxu0 0
    %2276 = vmatpush1.bf16.msra.mxu0 %v2003
    %2277 = vmatprep.subr.bf16.mxu0 0
    %2278 = vmatpush1.bf16.msra.mxu0 %v2004
    %2279 = vmatprep.subr.bf16.mxu0 0
    %2280 = vmatpush1.bf16.msra.mxu0 %v2005
    %2281 = vmatprep.subr.bf16.mxu0 0
    %2282 = vmatpush1.bf16.msra.mxu0 %v2006
    %2283 = vmatprep.subr.bf16.mxu0 0
    %2284 = vmatpush1.bf16.msra.mxu0 %v2007
    %2285 = vmatprep.subr.bf16.mxu0 0
    %2286 = vmatpush1.bf16.msra.mxu0 %v2008
    %2287 = vmatprep.subr.bf16.mxu0 0
    %2288 = vmatpush1.bf16.msra.mxu0 %v2009
    %2289 = vmatprep.subr.bf16.mxu0 0
    %2290 = vmatpush1.bf16.msra.mxu0 %v2010
    %2291 = vmatprep.subr.bf16.mxu0 0
    %2292 = vmatpush1.bf16.msra.mxu0 %v2011
    %2293 = vmatprep.subr.bf16.mxu0 0
    %2294 = vmatpush1.bf16.msra.mxu0 %v2012
    %2295 = vmatprep.subr.bf16.mxu0 0
    %2296 = vmatpush1.bf16.msra.mxu0 %v2013
    %2297 = vmatprep.subr.bf16.mxu0 0
    %2298 = vmatpush1.bf16.msra.mxu0 %v2014
    %2299 = vmatprep.subr.bf16.mxu0 0
    %2300 = vmatpush1.bf16.msra.mxu0 %v2015
    %2301 = vmatprep.subr.bf16.mxu0 0
    %2302 = vmatpush1.bf16.msra.mxu0 %v2016
    %2303 = vmatprep.subr.bf16.mxu0 0
    %2304 = vmatpush1.bf16.msra.mxu0 %v2017
    %2305 = vmatprep.subr.bf16.mxu0 0
    %2306 = vmatpush1.bf16.msra.mxu0 %v2018
    %2307 = vmatprep.mubr.bf16.mxu0 %v1574
    %2308 = vmatmul.mubr.bf16.gmra.mrb[0].mxu0 %v1573
    %v2309 = vpop.f32.mrb[0].mxu0
    %v2310 = vadd.f32 %v2270, %v2309
    %v2311 = vpop.f32.mrb[0].mxu0
    %v2312 = vpop.f32.mrb[0].mxu0
    %v2313 = vpop.f32.mrb[0].mxu0
    %2314 = vdwg.mxu0
    %2315 = vmatprep.subr.bf16.mxu0 0
    %2316 = vmatpush1.bf16.msra.mxu0 %v2019
    %2317 = vmatprep.subr.bf16.mxu0 0
    %2318 = vmatpush1.bf16.msra.mxu0 %v2020
    %2319 = vmatprep.subr.bf16.mxu0 0
    %2320 = vmatpush1.bf16.msra.mxu0 %v2021
    %2321 = vmatprep.subr.bf16.mxu0 0
    %2322 = vmatpush1.bf16.msra.mxu0 %v2022
    %2323 = vmatprep.subr.bf16.mxu0 0
    %2324 = vmatpush1.bf16.msra.mxu0 %v2023
    %2325 = vmatprep.subr.bf16.mxu0 0
    %2326 = vmatpush1.bf16.msra.mxu0 %v2024
    %2327 = vmatprep.subr.bf16.mxu0 0
    %2328 = vmatpush1.bf16.msra.mxu0 %v2025
    %2329 = vmatprep.subr.bf16.mxu0 0
    %2330 = vmatpush1.bf16.msra.mxu0 %v2026
    %2331 = vmatprep.subr.bf16.mxu0 0
    %2332 = vmatpush1.bf16.msra.mxu0 0
    %2333 = vmatprep.subr.bf16.mxu0 0
    %2334 = vmatpush1.bf16.msra.mxu0 0
    %2335 = vmatprep.subr.bf16.mxu0 0
    %2336 = vmatpush1.bf16.msra.mxu0 0
    %2337 = vmatprep.subr.bf16.mxu0 0
    %2338 = vmatpush1.bf16.msra.mxu0 0
    %2339 = vmatprep.subr.bf16.mxu0 0
    %2340 = vmatpush1.bf16.msra.mxu0 0
    %2341 = vmatprep.subr.bf16.mxu0 0
    %2342 = vmatpush1.bf16.msra.mxu0 0
    %2343 = vmatprep.subr.bf16.mxu0 0
    %2344 = vmatpush1.bf16.msra.mxu0 0
    %2345 = vmatprep.subr.bf16.mxu0 0
    %2346 = vmatpush1.bf16.msra.mxu0 0
    %2347 = vmatprep.mubr.bf16.mxu0 0
    %2348 = vmatmul.mubr.bf16.gmra.mrb[0].mxu0 %v1575
    %v2349 = vpop.f32.mrb[0].mxu0
    %v2350 = vadd.f32 %v2310, %v2349
    %v2351 = vpop.f32.mrb[0].mxu0
    %v2352 = vpop.f32.mrb[0].mxu0
    %v2353 = vpop.f32.mrb[0].mxu0
    %2354 = vdwg.mxu0
    %s2355 = scalar_lea.vmem [#allocation8], 640
    %v2356 = vld [vmem:[%s2355] sm:$0xf]
    %v2357 = vld [vmem:[%s2355 + $0x4] sm:$0xf]
    %v2358 = vld [vmem:[%s2355 + $0x8] sm:$0xf]
    %v2359 = vld [vmem:[%s2355 + $0xc] sm:$0xf]
    %v2360 = vld [vmem:[%s2355 + $0x10] sm:$0xf]
    %v2361 = vld [vmem:[%s2355 + $0x14] sm:$0xf]
    %v2362 = vld [vmem:[%s2355 + $0x18] sm:$0xf]
    %v2363 = vld [vmem:[%s2355 + $0x1c] sm:$0xf]
    %v2364 = vld [vmem:[%s2355 + $0x20] sm:$0xf]
    %v2365 = vld [vmem:[%s2355 + $0x24] sm:$0xf]
    %v2366 = vld [vmem:[%s2355 + $0x28] sm:$0xf]
    %v2367 = vld [vmem:[%s2355 + $0x2c] sm:$0xf]
    %v2368 = vld [vmem:[%s2355 + $0x30] sm:$0xf]
    %v2369 = vld [vmem:[%s2355 + $0x34] sm:$0xf]
    %v2370 = vld [vmem:[%s2355 + $0x38] sm:$0xf]
    %v2371 = vld [vmem:[%s2355 + $0x3c] sm:$0xf]
    %v2372 = vld [vmem:[#allocation9 + $0xa] sm:$0x1]
    %v2373 = vlaneseq
    %v2374 = vshrl.u32 %v2373, 7
    %v2375 = vsub.s32 0, %v2374
    %v2376 = vrot.slane %v2372, %v2375
    %v2393 = vunpack.c.l.b16 %v2356
    %v2394 = vunpack.c.l.b16 %v2357
    %v2395 = vunpack.c.l.b16 %v2358
    %v2396 = vunpack.c.l.b16 %v2359
    %v2397 = vunpack.c.l.b16 %v2360
    %v2398 = vunpack.c.l.b16 %v2361
    %v2399 = vunpack.c.l.b16 %v2362
    %v2400 = vunpack.c.l.b16 %v2363
    %v2401 = vunpack.c.l.b16 %v2364
    %v2402 = vunpack.c.l.b16 %v2365
    %v2403 = vunpack.c.l.b16 %v2366
    %v2404 = vunpack.c.l.b16 %v2367
    %v2405 = vunpack.c.l.b16 %v2368
    %v2406 = vunpack.c.l.b16 %v2369
    %v2407 = vunpack.c.l.b16 %v2370
    %v2408 = vunpack.c.l.b16 %v2371
    %v2409 = vpack.c.b16 %v2394, %v2393
    %v2410 = vpack.c.b16 %v2396, %v2395
    %v2411 = vpack.c.b16 %v2398, %v2397
    %v2412 = vpack.c.b16 %v2400, %v2399
    %v2413 = vpack.c.b16 %v2402, %v2401
    %v2414 = vpack.c.b16 %v2404, %v2403
    %v2415 = vpack.c.b16 %v2406, %v2405
    %v2416 = vpack.c.b16 %v2408, %v2407
    %2425 = vmatprep.subr.bf16.mxu0 0
    %2426 = vmatpush1.bf16.msra.mxu0 %v2409
    %2427 = vmatprep.subr.bf16.mxu0 0
    %2428 = vmatpush1.bf16.msra.mxu0 %v2410
    %2429 = vmatprep.subr.bf16.mxu0 0
    %2430 = vmatpush1.bf16.msra.mxu0 %v2411
    %2431 = vmatprep.subr.bf16.mxu0 0
    %2432 = vmatpush1.bf16.msra.mxu0 %v2412
    %2433 = vmatprep.subr.bf16.mxu0 0
    %2434 = vmatpush1.bf16.msra.mxu0 %v2413
    %2435 = vmatprep.subr.bf16.mxu0 0
    %2436 = vmatpush1.bf16.msra.mxu0 %v2414
    %2437 = vmatprep.subr.bf16.mxu0 0
    %2438 = vmatpush1.bf16.msra.mxu0 %v2415
    %2439 = vmatprep.subr.bf16.mxu0 0
    %2440 = vmatpush1.bf16.msra.mxu0 %v2416
    %2441 = vmatprep.subr.bf16.mxu0 0
    %2442 = vmatpush1.bf16.msra.mxu0 0
    %2443 = vmatprep.subr.bf16.mxu0 0
    %2444 = vmatpush1.bf16.msra.mxu0 0
    %2445 = vmatprep.subr.bf16.mxu0 0
    %2446 = vmatpush1.bf16.msra.mxu0 0
    %2447 = vmatprep.subr.bf16.mxu0 0
    %2448 = vmatpush1.bf16.msra.mxu0 0
    %2449 = vmatprep.subr.bf16.mxu0 0
    %2450 = vmatpush1.bf16.msra.mxu0 0
    %2451 = vmatprep.subr.bf16.mxu0 0
    %2452 = vmatpush1.bf16.msra.mxu0 0
    %2453 = vmatprep.subr.bf16.mxu0 0
    %2454 = vmatpush1.bf16.msra.mxu0 0
    %2455 = vmatprep.subr.bf16.mxu0 0
    %2456 = vmatpush1.bf16.msra.mxu0 0
    %2457 = vmatprep.mubr.bf16.mxu0 0
    %2458 = vmatmul.mubr.bf16.gmra.mrb[0].mxu0 %v1357
    %v2459 = vpop.f32.mrb[0].mxu0
    %v2460 = vadd.f32 %v2376, %v2459
    %v2461 = vpop.f32.mrb[0].mxu0
    %v2462 = vpop.f32.mrb[0].mxu0
    %v2463 = vpop.f32.mrb[0].mxu0
    %2464 = vdwg.mxu0
    %v2465 = vmax.f32 %v2460, 0.0
    %v2466 = vpack.c.bf16 %v2465, %v2465
    %s2467 = scalar_lea.vmem [#allocation8], 704
    %v2468 = vld [vmem:[%s2467] sm:$0xf]
    %v2469 = vld [vmem:[%s2467 + $0x4] sm:$0xf]
    %v2470 = vld [vmem:[%s2467 + $0x8] sm:$0xf]
    %v2471 = vld [vmem:[%s2467 + $0xc] sm:$0xf]
    %v2472 = vld [vmem:[%s2467 + $0x10] sm:$0xf]
    %v2473 = vld [vmem:[%s2467 + $0x14] sm:$0xf]
    %v2474 = vld [vmem:[%s2467 + $0x18] sm:$0xf]
    %v2475 = vld [vmem:[%s2467 + $0x1c] sm:$0xf]
    %v2476 = vld [vmem:[%s2467 + $0x20] sm:$0xf]
    %v2477 = vld [vmem:[%s2467 + $0x24] sm:$0xf]
    %v2478 = vld [vmem:[%s2467 + $0x28] sm:$0xf]
    %v2479 = vld [vmem:[%s2467 + $0x2c] sm:$0xf]
    %v2480 = vld [vmem:[%s2467 + $0x30] sm:$0xf]
    %v2481 = vld [vmem:[%s2467 + $0x34] sm:$0xf]
    %v2482 = vld [vmem:[%s2467 + $0x38] sm:$0xf]
    %v2483 = vld [vmem:[%s2467 + $0x3c] sm:$0xf]
    %v2484 = vld [vmem:[#allocation9 + $0xb] sm:$0x1]
    %v2485 = vlaneseq
    %v2486 = vshrl.u32 %v2485, 7
    %v2487 = vsub.s32 0, %v2486
    %v2488 = vrot.slane %v2484, %v2487
    %v2505 = vunpack.c.l.b16 %v2468
    %v2506 = vunpack.c.l.b16 %v2469
    %v2507 = vunpack.c.l.b16 %v2470
    %v2508 = vunpack.c.l.b16 %v2471
    %v2509 = vunpack.c.l.b16 %v2472
    %v2510 = vunpack.c.l.b16 %v2473
    %v2511 = vunpack.c.l.b16 %v2474
    %v2512 = vunpack.c.l.b16 %v2475
    %v2513 = vunpack.c.l.b16 %v2476
    %v2514 = vunpack.c.l.b16 %v2477
    %v2515 = vunpack.c.l.b16 %v2478
    %v2516 = vunpack.c.l.b16 %v2479
    %v2517 = vunpack.c.l.b16 %v2480
    %v2518 = vunpack.c.l.b16 %v2481
    %v2519 = vunpack.c.l.b16 %v2482
    %v2520 = vunpack.c.l.b16 %v2483
    %v2521 = vpack.c.b16 %v2506, %v2505
    %v2522 = vpack.c.b16 %v2508, %v2507
    %v2523 = vpack.c.b16 %v2510, %v2509
    %v2524 = vpack.c.b16 %v2512, %v2511
    %v2525 = vpack.c.b16 %v2514, %v2513
    %v2526 = vpack.c.b16 %v2516, %v2515
    %v2527 = vpack.c.b16 %v2518, %v2517
    %v2528 = vpack.c.b16 %v2520, %v2519
    %2537 = vmatprep.subr.bf16.mxu0 0
    %2538 = vmatpush1.bf16.msra.mxu0 %v2521
    %2539 = vmatprep.subr.bf16.mxu0 0
    %2540 = vmatpush1.bf16.msra.mxu0 %v2522
    %2541 = vmatprep.subr.bf16.mxu0 0
    %2542 = vmatpush1.bf16.msra.mxu0 %v2523
    %2543 = vmatprep.subr.bf16.mxu0 0
    %2544 = vmatpush1.bf16.msra.mxu0 %v2524
    %2545 = vmatprep.subr.bf16.mxu0 0
    %2546 = vmatpush1.bf16.msra.mxu0 %v2525
    %2547 = vmatprep.subr.bf16.mxu0 0
    %2548 = vmatpush1.bf16.msra.mxu0 %v2526
    %2549 = vmatprep.subr.bf16.mxu0 0
    %2550 = vmatpush1.bf16.msra.mxu0 %v2527
    %2551 = vmatprep.subr.bf16.mxu0 0
    %2552 = vmatpush1.bf16.msra.mxu0 %v2528
    %2553 = vmatprep.subr.bf16.mxu0 0
    %2554 = vmatpush1.bf16.msra.mxu0 0
    %2555 = vmatprep.subr.bf16.mxu0 0
    %2556 = vmatpush1.bf16.msra.mxu0 0
    %2557 = vmatprep.subr.bf16.mxu0 0
    %2558 = vmatpush1.bf16.msra.mxu0 0
    %2559 = vmatprep.subr.bf16.mxu0 0
    %2560 = vmatpush1.bf16.msra.mxu0 0
    %2561 = vmatprep.subr.bf16.mxu0 0
    %2562 = vmatpush1.bf16.msra.mxu0 0
    %2563 = vmatprep.subr.bf16.mxu0 0
    %2564 = vmatpush1.bf16.msra.mxu0 0
    %2565 = vmatprep.subr.bf16.mxu0 0
    %2566 = vmatpush1.bf16.msra.mxu0 0
    %2567 = vmatprep.subr.bf16.mxu0 0
    %2568 = vmatpush1.bf16.msra.mxu0 0
    %2569 = vmatprep.mubr.bf16.mxu0 0
    %2570 = vmatmul.mubr.bf16.gmra.mrb[0].mxu0 %v2466
    %v2571 = vpop.f32.mrb[0].mxu0
    %v2572 = vadd.f32 %v2488, %v2571
    %v2573 = vpop.f32.mrb[0].mxu0
    %v2574 = vpop.f32.mrb[0].mxu0
    %v2575 = vpop.f32.mrb[0].mxu0
    %2576 = vdwg.mxu0
    %v2577 = vadd.f32 %v2572, %v2350
    %v2578 = vmax.f32 %v2577, 0.0
    %v2579 = vpack.c.bf16 %v2578, %v2578
    %v2580 = vld [vmem:[#allocation12] sm:$0xf]
    %v2581 = vld [vmem:[#allocation12 + $0x4] sm:$0xf]
    %v2582 = vld [vmem:[#allocation12 + $0x8] sm:$0xf]
    %v2583 = vld [vmem:[#allocation12 + $0xc] sm:$0xf]
    %v2584 = vld [vmem:[#allocation12 + $0x10] sm:$0xf]
    %v2585 = vld [vmem:[#allocation12 + $0x14] sm:$0xf]
    %v2586 = vld [vmem:[#allocation12 + $0x18] sm:$0xf]
    %v2587 = vld [vmem:[#allocation12 + $0x1c] sm:$0xf]
    %v2588 = vld [vmem:[#allocation12 + $0x20] sm:$0xf]
    %v2589 = vld [vmem:[#allocation12 + $0x24] sm:$0xf]
    %v2590 = vld [vmem:[#allocation12 + $0x28] sm:$0xf]
    %v2591 = vld [vmem:[#allocation12 + $0x2c] sm:$0xf]
    %v2592 = vld [vmem:[#allocation12 + $0x30] sm:$0xf]
    %v2593 = vld [vmem:[#allocation12 + $0x34] sm:$0xf]
    %v2594 = vld [vmem:[#allocation12 + $0x38] sm:$0xf]
    %v2595 = vld [vmem:[#allocation12 + $0x3c] sm:$0xf]
    %v2596 = vld [vmem:[%s8] sm:$0x1]
    %v2598 = vlaneseq
    %v2599 = vshrl.u32 %v2598, 7
    %v2600 = vsub.s32 0, %v2599
    %v2601 = vrot.slane %v2596, %v2600
    %v2619 = vunpack.c.l.b16 %v2580
    %v2620 = vunpack.c.l.b16 %v2581
    %v2621 = vunpack.c.l.b16 %v2582
    %v2622 = vunpack.c.l.b16 %v2583
    %v2623 = vunpack.c.l.b16 %v2584
    %v2624 = vunpack.c.l.b16 %v2585
    %v2625 = vunpack.c.l.b16 %v2586
    %v2626 = vunpack.c.l.b16 %v2587
    %v2627 = vunpack.c.l.b16 %v2588
    %v2628 = vunpack.c.l.b16 %v2589
    %v2629 = vunpack.c.l.b16 %v2590
    %v2630 = vunpack.c.l.b16 %v2591
    %v2631 = vunpack.c.l.b16 %v2592
    %v2632 = vunpack.c.l.b16 %v2593
    %v2633 = vunpack.c.l.b16 %v2594
    %v2634 = vunpack.c.l.b16 %v2595
    %v2635 = vpack.c.b16 %v2620, %v2619
    %v2636 = vpack.c.b16 %v2622, %v2621
    %v2637 = vpack.c.b16 %v2624, %v2623
    %v2638 = vpack.c.b16 %v2626, %v2625
    %v2639 = vpack.c.b16 %v2628, %v2627
    %v2640 = vpack.c.b16 %v2630, %v2629
    %v2641 = vpack.c.b16 %v2632, %v2631
    %v2642 = vpack.c.b16 %v2634, %v2633
    %2651 = vmatprep.subr.bf16.mxu0 0
    %2652 = vmatpush1.bf16.msra.mxu0 %v2635
    %2653 = vmatprep.subr.bf16.mxu0 0
    %2654 = vmatpush1.bf16.msra.mxu0 %v2636
    %2655 = vmatprep.subr.bf16.mxu0 0
    %2656 = vmatpush1.bf16.msra.mxu0 %v2637
    %2657 = vmatprep.subr.bf16.mxu0 0
    %2658 = vmatpush1.bf16.msra.mxu0 %v2638
    %2659 = vmatprep.subr.bf16.mxu0 0
    %2660 = vmatpush1.bf16.msra.mxu0 %v2639
    %2661 = vmatprep.subr.bf16.mxu0 0
    %2662 = vmatpush1.bf16.msra.mxu0 %v2640
    %2663 = vmatprep.subr.bf16.mxu0 0
    %2664 = vmatpush1.bf16.msra.mxu0 %v2641
    %2665 = vmatprep.subr.bf16.mxu0 0
    %2666 = vmatpush1.bf16.msra.mxu0 %v2642
    %2667 = vmatprep.subr.bf16.mxu0 0
    %2668 = vmatpush1.bf16.msra.mxu0 0
    %2669 = vmatprep.subr.bf16.mxu0 0
    %2670 = vmatpush1.bf16.msra.mxu0 0
    %2671 = vmatprep.subr.bf16.mxu0 0
    %2672 = vmatpush1.bf16.msra.mxu0 0
    %2673 = vmatprep.subr.bf16.mxu0 0
    %2674 = vmatpush1.bf16.msra.mxu0 0
    %2675 = vmatprep.subr.bf16.mxu0 0
    %2676 = vmatpush1.bf16.msra.mxu0 0
    %2677 = vmatprep.subr.bf16.mxu0 0
    %2678 = vmatpush1.bf16.msra.mxu0 0
    %2679 = vmatprep.subr.bf16.mxu0 0
    %2680 = vmatpush1.bf16.msra.mxu0 0
    %2681 = vmatprep.subr.bf16.mxu0 0
    %2682 = vmatpush1.bf16.msra.mxu0 0
    %2683 = vmatprep.mubr.bf16.mxu0 0
    %2684 = vmatmul.mubr.bf16.gmra.mrb[0].mxu0 %v2579
    %v2685 = vpop.f32.mrb[0].mxu0
    %v2686 = vadd.f32 %v2601, %v2685
    %v2687 = vpop.f32.mrb[0].mxu0
    %v2688 = vpop.f32.mrb[0].mxu0
    %v2689 = vpop.f32.mrb[0].mxu0
    %2690 = vdwg.mxu0
    %2691 = vmax.xlane.f32.xlu0 %v2686
    %v2692 = vpop.xlane.xlu0 %2691
    %v2693 = vsub.f32 %v2686, %v2692
    %v2694 = vmul.f32 %v2693, 1.442695
    %v2695 = vpow.pop %v2694
    %2696 = vadd.xlane.f32.xlu0 %v2695
    %v2697 = vpop.xlane.xlu0 %2696
    %v2698 = vlog2.pop %v2697
    %v2699 = vmul.f32 %v2698, 0.6931472
    %v2700 = vsub.f32 %v2693, %v2699
    %2701 = vst [vmem:[#allocation14] sm:$0xff] %v2700
    // Predicated region
    $region62: #{tpu_custom_call.1} parent=1 // pred_check
      _
    $region63: #{tpu_custom_call.1} parent=1 // pred_check_branch
      %2703 = sbr.rel (0) target = $region65
    $region64: #{tpu_custom_call.1} parent=1 // pred_region
      %s2705 = ssub.s32 128, 128
      %2706 = vsyncadd [#allocation5], %s2705
      %s2708 = sshll.u32 [#allocation14], 4
      %s2709 = int_to_ptr.vmem [resolvable:$true] %s2708
      %2711 = dma.vmem_to_hbm [thread:$0]  %s2709, 128, %s9, [#allocation5]
    $region65: #{tpu_custom_call.1} parent=1 // pred_fallthru
      _
    // Predicated region
    $region66: #{tpu_custom_call.1} parent=1 // pred_check
      _
    $region67: #{tpu_custom_call.1} parent=1 // pred_check_branch
      %2713 = sbr.rel (0) target = $region69
    $region68: #{tpu_custom_call.1} parent=1 // pred_region
      %2714 = dma.done [#allocation5], 128
    $region69: #{tpu_custom_call.1} parent=1 // pred_fallthru
      _
    %2715 = vsyncpa [#allocation4], 1
    %2716 = vsyncpa [#allocation7], 1
    %2717 = vsyncpa [#allocation10], 1
    %2718 = vsyncpa [#allocation13], 1
    %2719 = vsyncpa [#allocation5], 1

</llo_original>
